<compile_context>
chip_gen: v7x
topology: tpu7x:2x2x1
jax: 0.10.0
libtpu: 0.0.40
codegen_flags: <defaults>
</compile_context>

<pallas_src>
import functools

import jax
import jax.numpy as jnp
from jax.experimental import pallas as pl
from jax.experimental.pallas import tpu as pltpu


LATENT = 16
H1, H2 = 256, 512
HIDDEN = 128
OUTPUT = 28 * 28          # 784
OUT_PADDED = 7 * 128      # 896, lane-dense output width (sliced back to 784)


def _round_up(x, m):
    return ((x + m - 1) // m) * m


def decoder_kernel(x_ref,
                   w1_ref, b1_ref,
                   w2_ref, b2_ref,
                   w3_ref, b3_ref,
                   w4_ref, b4_ref,
                   o_ref):
    """Whole MLP for one batch tile. Matmuls on the MXU (bf16 or f32 inputs,
    f32 accumulation); bias/ReLU/sigmoid in f32 on the VPU/EUP."""
    cdt = w1_ref.dtype  # compute dtype for matmul inputs (bf16 or f32)

    x = x_ref[...]
    h = jnp.dot(x, w1_ref[...], preferred_element_type=jnp.float32) + b1_ref[...]
    h = jnp.maximum(h, 0.0)

    h = jnp.dot(h.astype(cdt), w2_ref[...],
                preferred_element_type=jnp.float32) + b2_ref[...]
    h = jnp.maximum(h, 0.0)

    h = jnp.dot(h.astype(cdt), w3_ref[...],
                preferred_element_type=jnp.float32) + b3_ref[...]
    h = jnp.maximum(h, 0.0)

    z = jnp.dot(h.astype(cdt), w4_ref[...],
                preferred_element_type=jnp.float32) + b4_ref[...]
    o_ref[...] = jax.nn.sigmoid(z).astype(o_ref.dtype)


@functools.partial(jax.jit, static_argnames=("batch_tile", "use_bf16"))
def decoder1_forward(x, params, *, batch_tile=256, use_bf16=True):
    """x: (B, LATENT) float32. params: weights (in, out), biases (1, out).

    Returns (B, 784) float32. Handles arbitrary B by zero-padding the batch to
    a multiple of the batch tile; the last layer is padded to 896 lanes inside
    the kernel and sliced back to 784 here.
    """
    B, L = x.shape
    assert L == LATENT and B > 0

    # Pick an effective tile: <= batch_tile, multiple of 8, >= padded batch
    # only when B is small. Pad B up to a multiple of the tile.
    tile = _round_up(min(batch_tile, _round_up(B, 8)), 8)
    Bp = _round_up(B, tile)

    compute_dtype = jnp.bfloat16 if use_bf16 else jnp.float32

    xp = jnp.zeros((Bp, LATENT), compute_dtype).at[:B].set(x.astype(compute_dtype))

    w1 = params["w1"].astype(compute_dtype)
    w2 = params["w2"].astype(compute_dtype)
    w3 = params["w3"].astype(compute_dtype)
    # Pad the last layer to the lane-dense width (896); extra columns are 0.
    w4 = jnp.pad(params["w4"], ((0, 0), (0, OUT_PADDED - OUTPUT))).astype(compute_dtype)

    b1 = params["b1"].astype(jnp.float32)
    b2 = params["b2"].astype(jnp.float32)
    b3 = params["b3"].astype(jnp.float32)
    b4 = jnp.pad(params["b4"].astype(jnp.float32),
                 ((0, 0), (0, OUT_PADDED - OUTPUT)))

    full = lambda arr: pl.BlockSpec(arr.shape, lambda i: (0, 0))

    itemsize = jnp.dtype(compute_dtype).itemsize
    weight_bytes = itemsize * (w1.size + w2.size + w3.size + w4.size) \
        + 4 * (b1.size + b2.size + b3.size + b4.size)
    flops_per_row = 2 * (LATENT * H1 + H1 * H2 + H2 * HIDDEN + HIDDEN * OUT_PADDED)
    cost = pl.CostEstimate(
        flops=Bp * flops_per_row,
        transcendentals=Bp * OUT_PADDED,  # sigmoid
        bytes_accessed=itemsize * Bp * LATENT + 4 * Bp * OUT_PADDED + weight_bytes,
    )

    out = pl.pallas_call(
        decoder_kernel,
        out_shape=jax.ShapeDtypeStruct((Bp, OUT_PADDED), jnp.float32),
        grid_spec=pltpu.PrefetchScalarGridSpec(
            num_scalar_prefetch=0,
            grid=(Bp // tile,),
            in_specs=[
                pl.BlockSpec((tile, LATENT), lambda i: (i, 0)),  # x tile
                full(w1), full(b1),
                full(w2), full(b2),
                full(w3), full(b3),
                full(w4), full(b4),
            ],
            out_specs=pl.BlockSpec((tile, OUT_PADDED), lambda i: (i, 0)),
        ),
        compiler_params=pltpu.CompilerParams(
            # Batch tiles are independent -> megacore-shardable on v7x.
            dimension_semantics=("parallel",),
            # Note: if batch_tile is pushed >= ~1024 on v7x (64 MiB VMEM),
            # also set vmem_limit_bytes here; default tile sizes fit easily.
        ),
        cost_estimate=cost,
    )(xp, w1, b1, w2, b2, w3, b3, w4, b4)

    return out[:B, :OUTPUT]


def init_params(key):
    """Deterministic init mimicking PyTorch nn.Linear default (U(-1/sqrt(fan_in), +))."""
    def linear(key, fan_in, fan_out):
        kw, kb = jax.random.split(key)
        bound = 1.0 / jnp.sqrt(fan_in)
        w = jax.random.uniform(kw, (fan_in, fan_out), jnp.float32, -bound, bound)
        b = jax.random.uniform(kb, (1, fan_out), jnp.float32, -bound, bound)
        return w, b

    k1, k2, k3, k4 = jax.random.split(key, 4)
    w1, b1 = linear(k1, LATENT, H1)
    w2, b2 = linear(k2, H1, H2)
    w3, b3 = linear(k3, H2, HIDDEN)
    w4, b4 = linear(k4, HIDDEN, OUTPUT)
    return dict(w1=w1, b1=b1, w2=w2, b2=b2, w3=w3, b3=b3, w4=w4, b4=b4)


def reference_forward(x, p):
    h = jax.nn.relu(x @ p["w1"] + p["b1"])
    h = jax.nn.relu(h @ p["w2"] + p["b2"])
    h = jax.nn.relu(h @ p["w3"] + p["b3"])
    return jax.nn.sigmoid(h @ p["w4"] + p["b4"])


if __name__ == "__main__":
    key = jax.random.PRNGKey(0)
    kx, kp = jax.random.split(key)

    B = 32  # small demo batch; wrapper pads/tiles as needed
    x = jax.random.normal(kx, (B, LATENT), jnp.float32)
    params = init_params(kp)

    # bf16 matmul path (f32 accumulation + f32 sigmoid)
    out = decoder1_forward(x, params, batch_tile=256, use_bf16=True)
    out = jax.block_until_ready(out)

    ref = reference_forward(x, params)
    assert out.shape == (B, OUTPUT)
    assert float(jnp.max(jnp.abs(out - ref))) < 2e-2, "bf16 path mismatch vs reference"

    # f32 matmul path for a tight numerical check
    out_f32 = decoder1_forward(x, params, batch_tile=256, use_bf16=False)
    out_f32 = jax.block_until_ready(out_f32)
    assert jnp.allclose(out_f32, ref, atol=1e-5, rtol=1e-5), "f32 path mismatch vs reference"

    print("KERNEL_OK")
</pallas_src>

<mosaic_0001>
module attributes {stable_mosaic.version = 11 : i64} {
  func.func @decoder_kernel(%arg0: i32, %arg1: memref<32x16xbf16, #tpu.memory_space<vmem>>, %arg2: memref<16x256xbf16, #tpu.memory_space<vmem>>, %arg3: memref<1x256xf32, #tpu.memory_space<vmem>>, %arg4: memref<256x512xbf16, #tpu.memory_space<vmem>>, %arg5: memref<1x512xf32, #tpu.memory_space<vmem>>, %arg6: memref<512x128xbf16, #tpu.memory_space<vmem>>, %arg7: memref<1x128xf32, #tpu.memory_space<vmem>>, %arg8: memref<128x896xbf16, #tpu.memory_space<vmem>>, %arg9: memref<1x896xf32, #tpu.memory_space<vmem>>, %arg10: memref<32x896xf32, #tpu.memory_space<vmem>>) attributes {dimension_semantics = [#tpu.dimension_semantics<parallel>], iteration_bounds = array<i64: 1>, scalar_prefetch = 0 : i64, scratch_operands = 0 : i64, tpu.core_type = #tpu.core_type<tc>, window_params = [{transform_indices = @transform_0, window_bounds = array<i64: 32, 16>}, {pipeline_mode = #tpu.pipeline_mode<synchronous>, transform_indices = @transform_1, window_bounds = array<i64: 16, 256>}, {pipeline_mode = #tpu.pipeline_mode<synchronous>, transform_indices = @transform_2, window_bounds = array<i64: 1, 256>}, {pipeline_mode = #tpu.pipeline_mode<synchronous>, transform_indices = @transform_3, window_bounds = array<i64: 256, 512>}, {pipeline_mode = #tpu.pipeline_mode<synchronous>, transform_indices = @transform_4, window_bounds = array<i64: 1, 512>}, {pipeline_mode = #tpu.pipeline_mode<synchronous>, transform_indices = @transform_5, window_bounds = array<i64: 512, 128>}, {pipeline_mode = #tpu.pipeline_mode<synchronous>, transform_indices = @transform_6, window_bounds = array<i64: 1, 128>}, {pipeline_mode = #tpu.pipeline_mode<synchronous>, transform_indices = @transform_7, window_bounds = array<i64: 128, 896>}, {pipeline_mode = #tpu.pipeline_mode<synchronous>, transform_indices = @transform_8, window_bounds = array<i64: 1, 896>}, {transform_indices = @transform_9, window_bounds = array<i64: 32, 896>}]} {
    %c0 = arith.constant 0 : index
    %c0_0 = arith.constant 0 : index
    %0 = vector.load %arg1[%c0, %c0_0] : memref<32x16xbf16, #tpu.memory_space<vmem>>, vector<32x16xbf16>
    %c0_1 = arith.constant 0 : index
    %c0_2 = arith.constant 0 : index
    %1 = vector.load %arg2[%c0_1, %c0_2] : memref<16x256xbf16, #tpu.memory_space<vmem>>, vector<16x256xbf16>
    %cst = arith.constant dense<0.000000e+00> : vector<32x256xf32>
    %2 = tpu.matmul %0, %1, %cst {dimension_numbers = #tpu.dot_dimension_numbers<[1], [0], [0], [1], [0, 0, 1, 1], [], []>} : vector<32x16xbf16>, vector<16x256xbf16>, vector<32x256xf32> -> vector<32x256xf32>
    %c0_3 = arith.constant 0 : index
    %c0_4 = arith.constant 0 : index
    %3 = vector.load %arg3[%c0_3, %c0_4] : memref<1x256xf32, #tpu.memory_space<vmem>>, vector<1x256xf32>
    %4 = vector.broadcast %3 : vector<1x256xf32> to vector<32x256xf32>
    %5 = arith.addf %2, %4 : vector<32x256xf32>
    %cst_5 = arith.constant 0.000000e+00 : f32
    %6 = vector.broadcast %cst_5 : f32 to vector<32x256xf32>
    %7 = arith.maximumf %5, %6 : vector<32x256xf32>
    %8 = arith.truncf %7 : vector<32x256xf32> to vector<32x256xbf16>
    %c0_6 = arith.constant 0 : index
    %c0_7 = arith.constant 0 : index
    %9 = vector.load %arg4[%c0_6, %c0_7] : memref<256x512xbf16, #tpu.memory_space<vmem>>, vector<256x512xbf16>
    %cst_8 = arith.constant dense<0.000000e+00> : vector<32x512xf32>
    %10 = tpu.matmul %8, %9, %cst_8 {dimension_numbers = #tpu.dot_dimension_numbers<[1], [0], [0], [1], [0, 0, 1, 1], [], []>} : vector<32x256xbf16>, vector<256x512xbf16>, vector<32x512xf32> -> vector<32x512xf32>
    %c0_9 = arith.constant 0 : index
    %c0_10 = arith.constant 0 : index
    %11 = vector.load %arg5[%c0_9, %c0_10] : memref<1x512xf32, #tpu.memory_space<vmem>>, vector<1x512xf32>
    %12 = vector.broadcast %11 : vector<1x512xf32> to vector<32x512xf32>
    %13 = arith.addf %10, %12 : vector<32x512xf32>
    %cst_11 = arith.constant 0.000000e+00 : f32
    %14 = vector.broadcast %cst_11 : f32 to vector<32x512xf32>
    %15 = arith.maximumf %13, %14 : vector<32x512xf32>
    %16 = arith.truncf %15 : vector<32x512xf32> to vector<32x512xbf16>
    %c0_12 = arith.constant 0 : index
    %c0_13 = arith.constant 0 : index
    %17 = vector.load %arg6[%c0_12, %c0_13] : memref<512x128xbf16, #tpu.memory_space<vmem>>, vector<512x128xbf16>
    %cst_14 = arith.constant dense<0.000000e+00> : vector<32x128xf32>
    %18 = tpu.matmul %16, %17, %cst_14 {dimension_numbers = #tpu.dot_dimension_numbers<[1], [0], [0], [1], [0, 0, 1, 1], [], []>} : vector<32x512xbf16>, vector<512x128xbf16>, vector<32x128xf32> -> vector<32x128xf32>
    %c0_15 = arith.constant 0 : index
    %c0_16 = arith.constant 0 : index
    %19 = vector.load %arg7[%c0_15, %c0_16] : memref<1x128xf32, #tpu.memory_space<vmem>>, vector<1x128xf32>
    %20 = vector.broadcast %19 : vector<1x128xf32> to vector<32x128xf32>
    %21 = arith.addf %18, %20 : vector<32x128xf32>
    %cst_17 = arith.constant 0.000000e+00 : f32
    %22 = vector.broadcast %cst_17 : f32 to vector<32x128xf32>
    %23 = arith.maximumf %21, %22 : vector<32x128xf32>
    %24 = arith.truncf %23 : vector<32x128xf32> to vector<32x128xbf16>
    %c0_18 = arith.constant 0 : index
    %c0_19 = arith.constant 0 : index
    %25 = vector.load %arg8[%c0_18, %c0_19] : memref<128x896xbf16, #tpu.memory_space<vmem>>, vector<128x896xbf16>
    %cst_20 = arith.constant dense<0.000000e+00> : vector<32x896xf32>
    %26 = tpu.matmul %24, %25, %cst_20 {dimension_numbers = #tpu.dot_dimension_numbers<[1], [0], [0], [1], [0, 0, 1, 1], [], []>} : vector<32x128xbf16>, vector<128x896xbf16>, vector<32x896xf32> -> vector<32x896xf32>
    %c0_21 = arith.constant 0 : index
    %c0_22 = arith.constant 0 : index
    %27 = vector.load %arg9[%c0_21, %c0_22] : memref<1x896xf32, #tpu.memory_space<vmem>>, vector<1x896xf32>
    %28 = vector.broadcast %27 : vector<1x896xf32> to vector<32x896xf32>
    %29 = arith.addf %26, %28 : vector<32x896xf32>
    %30 = arith.negf %29 : vector<32x896xf32>
    %31 = math.exp %30 : vector<32x896xf32>
    %cst_23 = arith.constant 1.000000e+00 : f32
    %32 = vector.broadcast %cst_23 : f32 to vector<32x896xf32>
    %33 = arith.addf %32, %31 : vector<32x896xf32>
    %34 = arith.divf %32, %33 : vector<32x896xf32>
    %c0_24 = arith.constant 0 : index
    %c0_25 = arith.constant 0 : index
    %35 = vector.load %arg10[%c0_24, %c0_25] : memref<32x896xf32, #tpu.memory_space<vmem>>, vector<32x896xf32>
    tpu.vector_store %arg10[%c0_24, %c0_25], %34 {strides = array<i32>} : memref<32x896xf32, #tpu.memory_space<vmem>>, vector<32x896xf32>,
    return
  }
  func.func @transform_0(%arg0: i32) -> (i32, i32) {
    %c0_i32 = arith.constant 0 : i32
    %c0_i32_0 = arith.constant 0 : i32
    return %arg0, %c0_i32 : i32, i32
  }
  func.func @transform_1(%arg0: i32) -> (i32, i32) {
    %c0_i32 = arith.constant 0 : i32
    %c0_i32_0 = arith.constant 0 : i32
    %c0_i32_1 = arith.constant 0 : i32
    return %c0_i32, %c0_i32_0 : i32, i32
  }
  func.func @transform_2(%arg0: i32) -> (i32, i32) {
    %c0_i32 = arith.constant 0 : i32
    %c0_i32_0 = arith.constant 0 : i32
    %c0_i32_1 = arith.constant 0 : i32
    return %c0_i32, %c0_i32_0 : i32, i32
  }
  func.func @transform_3(%arg0: i32) -> (i32, i32) {
    %c0_i32 = arith.constant 0 : i32
    %c0_i32_0 = arith.constant 0 : i32
    %c0_i32_1 = arith.constant 0 : i32
    return %c0_i32, %c0_i32_0 : i32, i32
  }
  func.func @transform_4(%arg0: i32) -> (i32, i32) {
    %c0_i32 = arith.constant 0 : i32
    %c0_i32_0 = arith.constant 0 : i32
    %c0_i32_1 = arith.constant 0 : i32
    return %c0_i32, %c0_i32_0 : i32, i32
  }
  func.func @transform_5(%arg0: i32) -> (i32, i32) {
    %c0_i32 = arith.constant 0 : i32
    %c0_i32_0 = arith.constant 0 : i32
    %c0_i32_1 = arith.constant 0 : i32
    return %c0_i32, %c0_i32_0 : i32, i32
  }
  func.func @transform_6(%arg0: i32) -> (i32, i32) {
    %c0_i32 = arith.constant 0 : i32
    %c0_i32_0 = arith.constant 0 : i32
    %c0_i32_1 = arith.constant 0 : i32
    return %c0_i32, %c0_i32_0 : i32, i32
  }
  func.func @transform_7(%arg0: i32) -> (i32, i32) {
    %c0_i32 = arith.constant 0 : i32
    %c0_i32_0 = arith.constant 0 : i32
    %c0_i32_1 = arith.constant 0 : i32
    return %c0_i32, %c0_i32_0 : i32, i32
  }
  func.func @transform_8(%arg0: i32) -> (i32, i32) {
    %c0_i32 = arith.constant 0 : i32
    %c0_i32_0 = arith.constant 0 : i32
    %c0_i32_1 = arith.constant 0 : i32
    return %c0_i32, %c0_i32_0 : i32, i32
  }
  func.func @transform_9(%arg0: i32) -> (i32, i32) {
    %c0_i32 = arith.constant 0 : i32
    %c0_i32_0 = arith.constant 0 : i32
    return %arg0, %c0_i32 : i32, i32
  }
}

</mosaic_0001>

<llo_original>
// kernel: decoder1_forward.1
$region0: #{decoder1_forward.1}
  #allocation0 [shape = 'u32[]', space=smem, size = 0x4, offset = 0x4, fixed_abs, tag = 'smem constant byte address 0x4 - core index']
  #allocation1 [shape = 'u32[144,128]{1,0:T(1,128)}', space=vmem, size = 0x12000, scoped, tag = 'internal scratch']
  %s0 = inlined_call_operand.vmem [shape: bf16[32,16], index: 0, kind: input, shape index: {}]
  %s1 = inlined_call_operand.vmem [shape: bf16[16,256], index: 1, kind: input, shape index: {}]
  %s2 = inlined_call_operand.vmem [shape: f32[1,256], index: 2, kind: input, shape index: {}]
  %s3 = inlined_call_operand.vmem [shape: bf16[256,512], index: 3, kind: input, shape index: {}]
  %s4 = inlined_call_operand.vmem [shape: f32[1,512], index: 4, kind: input, shape index: {}]
  %s5 = inlined_call_operand.vmem [shape: bf16[512,128], index: 5, kind: input, shape index: {}]
  %s6 = inlined_call_operand.vmem [shape: f32[1,128], index: 6, kind: input, shape index: {}]
  %s7 = inlined_call_operand.vmem [shape: bf16[128,896], index: 7, kind: input, shape index: {}]
  %s8 = inlined_call_operand.vmem [shape: f32[1,896], index: 8, kind: input, shape index: {}]
  %s9 = inlined_call_operand.hbm [shape: f32[32,896], index: 9, kind: output, shape index: {}]
  %s10 = sld [smem:[#allocation0]]
  $region46: #{decoder1_forward.1} parent=0
    _
  %s12 = ssub.s32 1, %s10
  %s13 = scalar_select 0, %s12, %s10
  $region1: #{decoder1_forward.1} parent=0
    #allocation2 [shape = 'u8[114688]{0}', space=vmem, size = 0x1c000, scoped, tag = 'output window, operand 0, single buffered']
    #allocation3 [shape = 's32[1]{0}', space=sflag, size = 0x4, scoped, tag = 'scoped memory for decoder1_forward.1']
    %14 = vsyncpa [#allocation3], 0
    // Predicated region
    $region2: #{decoder1_forward.1} parent=1 // pred_check
      _
    $region3: #{decoder1_forward.1} parent=1 // pred_check_branch
      %16 = sbr.rel (0) target = $region5
    $region4: #{decoder1_forward.1} parent=1 // pred_region
      _
    $region5: #{decoder1_forward.1} parent=1 // pred_fallthru
      _
    // Predicated region
    $region6: #{decoder1_forward.1} parent=1 // pred_check
      _
    $region7: #{decoder1_forward.1} parent=1 // pred_check_branch
      %18 = sbr.rel (0) target = $region9
    $region8: #{decoder1_forward.1} parent=1 // pred_region
      _
    $region9: #{decoder1_forward.1} parent=1 // pred_fallthru
      _
    // Predicated region
    $region10: #{decoder1_forward.1} parent=1 // pred_check
      _
    $region11: #{decoder1_forward.1} parent=1 // pred_check_branch
      %20 = sbr.rel (0) target = $region13
    $region12: #{decoder1_forward.1} parent=1 // pred_region
      _
    $region13: #{decoder1_forward.1} parent=1 // pred_fallthru
      _
    // Predicated region
    $region14: #{decoder1_forward.1} parent=1 // pred_check
      _
    $region15: #{decoder1_forward.1} parent=1 // pred_check_branch
      %22 = sbr.rel (0) target = $region17
    $region16: #{decoder1_forward.1} parent=1 // pred_region
      _
    $region17: #{decoder1_forward.1} parent=1 // pred_fallthru
      _
    // Predicated region
    $region18: #{decoder1_forward.1} parent=1 // pred_check
      _
    $region19: #{decoder1_forward.1} parent=1 // pred_check_branch
      %24 = sbr.rel (0) target = $region21
    $region20: #{decoder1_forward.1} parent=1 // pred_region
      _
    $region21: #{decoder1_forward.1} parent=1 // pred_fallthru
      _
    // Predicated region
    $region22: #{decoder1_forward.1} parent=1 // pred_check
      _
    $region23: #{decoder1_forward.1} parent=1 // pred_check_branch
      %26 = sbr.rel (0) target = $region25
    $region24: #{decoder1_forward.1} parent=1 // pred_region
      _
    $region25: #{decoder1_forward.1} parent=1 // pred_fallthru
      _
    // Predicated region
    $region26: #{decoder1_forward.1} parent=1 // pred_check
      _
    $region27: #{decoder1_forward.1} parent=1 // pred_check_branch
      %28 = sbr.rel (0) target = $region29
    $region28: #{decoder1_forward.1} parent=1 // pred_region
      _
    $region29: #{decoder1_forward.1} parent=1 // pred_fallthru
      _
    // Predicated region
    $region30: #{decoder1_forward.1} parent=1 // pred_check
      _
    $region31: #{decoder1_forward.1} parent=1 // pred_check_branch
      %30 = sbr.rel (0) target = $region33
    $region32: #{decoder1_forward.1} parent=1 // pred_region
      _
    $region33: #{decoder1_forward.1} parent=1 // pred_fallthru
      _
    // Predicated region
    $region34: #{decoder1_forward.1} parent=1 // pred_check
      _
    $region35: #{decoder1_forward.1} parent=1 // pred_check_branch
      %32 = sbr.rel (0) target = $region37
    $region36: #{decoder1_forward.1} parent=1 // pred_region
      _
    $region37: #{decoder1_forward.1} parent=1 // pred_fallthru
      _
    %v34 = vld [vmem:[%s0] sm:$0xf]
    %v35 = vld [vmem:[%s0 + $0x4] sm:$0xf]
    %v36 = vld [vmem:[%s0 + $0x8] sm:$0xf]
    %v37 = vld [vmem:[%s0 + $0xc] sm:$0xf]
    %v38 = vld [vmem:[%s1] sm:$0xff]
    %v39 = vld [vmem:[%s1 + $0x8] sm:$0xff]
    %v40 = vld [vmem:[%s2] sm:$0x3]
    %v42 = vlaneseq
    %v43 = vshrl.u32 %v42, 7
    %v44 = vsub.s32 0, %v43
    %v45 = vrot.slane %v40, %v44
    %v46 = vlaneseq
    %v47 = vshrl.u32 %v46, 7
    %v48 = vsub.s32 1, %v47
    %v49 = vrot.slane %v40, %v48
    %v56 = vunpack.c.l.b16 %v34
    %v57 = vunpack.c.l.b16 %v35
    %v58 = vunpack.c.l.b16 %v36
    %v59 = vunpack.c.l.b16 %v37
    %v60 = vpack.c.b16 %v57, %v56
    %v61 = vpack.c.b16 %v59, %v58
    %v64 = vunpack.c.l.b16 %v38
    %v65 = vunpack.c.h.b16 %v38
    %v66 = vunpack.c.l.b16 %v39
    %v67 = vunpack.c.h.b16 %v39
    %v68 = vpack.c.b16 %v66, %v64
    %v69 = vpack.c.b16 %v67, %v65
    %vm72 = vcmask 130048
    %v74 = vsel %vm72, %v60, 0
    %v77 = vsel %vm72, %v61, 0
    %79 = vmatprep.subr.bf16.mxu0 %v69
    %80 = vmatpush1.bf16.msra.mxu0 %v68
    %81 = vmatprep.subr.bf16.mxu0 0
    %82 = vmatpush1.bf16.msra.mxu0 0
    %83 = vmatprep.subr.bf16.mxu0 0
    %84 = vmatpush1.bf16.msra.mxu0 0
    %85 = vmatprep.subr.bf16.mxu0 0
    %86 = vmatpush1.bf16.msra.mxu0 0
    %87 = vmatprep.subr.bf16.mxu0 0
    %88 = vmatpush1.bf16.msra.mxu0 0
    %89 = vmatprep.subr.bf16.mxu0 0
    %90 = vmatpush1.bf16.msra.mxu0 0
    %91 = vmatprep.subr.bf16.mxu0 0
    %92 = vmatpush1.bf16.msra.mxu0 0
    %93 = vmatprep.subr.bf16.mxu0 0
    %94 = vmatpush1.bf16.msra.mxu0 0
    %95 = vmatprep.subr.bf16.mxu0 0
    %96 = vmatpush1.bf16.msra.mxu0 0
    %97 = vmatprep.subr.bf16.mxu0 0
    %98 = vmatpush1.bf16.msra.mxu0 0
    %99 = vmatprep.subr.bf16.mxu0 0
    %100 = vmatpush1.bf16.msra.mxu0 0
    %101 = vmatprep.subr.bf16.mxu0 0
    %102 = vmatpush1.bf16.msra.mxu0 0
    %103 = vmatprep.subr.bf16.mxu0 0
    %104 = vmatpush1.bf16.msra.mxu0 0
    %105 = vmatprep.subr.bf16.mxu0 0
    %106 = vmatpush1.bf16.msra.mxu0 0
    %107 = vmatprep.subr.bf16.mxu0 0
    %108 = vmatpush1.bf16.msra.mxu0 0
    %109 = vmatprep.subr.bf16.mxu0 0
    %110 = vmatpush1.bf16.msra.mxu0 0
    %111 = vmatprep.mubr.bf16.mxu0 0
    %112 = vmatmul.mubr.bf16.gmra.mrb[0].mxu0 %v74
    %v113 = vpop.f32.mrb[0].mxu0
    %v114 = vadd.f32 %v45, %v113
    %v115 = vpop.f32.mrb[0].mxu0
    %v116 = vadd.f32 %v49, %v115
    %v117 = vpop.f32.mrb[0].mxu0
    %v118 = vadd.f32 %v45, %v117
    %v119 = vpop.f32.mrb[0].mxu0
    %v120 = vadd.f32 %v49, %v119
    %121 = vmatprep.mubr.bf16.mxu0 0
    %122 = vmatmul.mubr.bf16.gmra.mrb[0].mxu0 %v77
    %v123 = vpop.f32.mrb[0].mxu0
    %v124 = vadd.f32 %v45, %v123
    %v125 = vpop.f32.mrb[0].mxu0
    %v126 = vadd.f32 %v49, %v125
    %v127 = vpop.f32.mrb[0].mxu0
    %v128 = vadd.f32 %v45, %v127
    %v129 = vpop.f32.mrb[0].mxu0
    %v130 = vadd.f32 %v49, %v129
    %131 = vdwg.mxu0
    %v132 = vmax.f32 %v114, 0.0
    %v133 = vmax.f32 %v116, 0.0
    %v134 = vmax.f32 %v118, 0.0
    %v135 = vmax.f32 %v120, 0.0
    %v136 = vmax.f32 %v124, 0.0
    %v137 = vmax.f32 %v126, 0.0
    %v138 = vmax.f32 %v128, 0.0
    %v139 = vmax.f32 %v130, 0.0
    %v140 = vpack.c.bf16 %v134, %v132
    %v141 = vpack.c.bf16 %v135, %v133
    %v142 = vpack.c.bf16 %v138, %v136
    %v143 = vpack.c.bf16 %v139, %v137
    %v144 = vld [vmem:[%s3] sm:$0xff]
    %v145 = vld [vmem:[%s3 + $0x8] sm:$0xff]
    %v146 = vld [vmem:[%s3 + $0x10] sm:$0xff]
    %v147 = vld [vmem:[%s3 + $0x18] sm:$0xff]
    %v148 = vld [vmem:[%s3 + $0x20] sm:$0xff]
    %v149 = vld [vmem:[%s3 + $0x28] sm:$0xff]
    %v150 = vld [vmem:[%s3 + $0x30] sm:$0xff]
    %v151 = vld [vmem:[%s3 + $0x38] sm:$0xff]
    %v152 = vld [vmem:[%s3 + $0x40] sm:$0xff]
    %v153 = vld [vmem:[%s3 + $0x48] sm:$0xff]
    %v154 = vld [vmem:[%s3 + $0x50] sm:$0xff]
    %v155 = vld [vmem:[%s3 + $0x58] sm:$0xff]
    %v156 = vld [vmem:[%s3 + $0x60] sm:$0xff]
    %v157 = vld [vmem:[%s3 + $0x68] sm:$0xff]
    %v158 = vld [vmem:[%s3 + $0x70] sm:$0xff]
    %v159 = vld [vmem:[%s3 + $0x78] sm:$0xff]
    %v160 = vld [vmem:[%s3 + $0x80] sm:$0xff]
    %v161 = vld [vmem:[%s3 + $0x88] sm:$0xff]
    %v162 = vld [vmem:[%s3 + $0x90] sm:$0xff]
    %v163 = vld [vmem:[%s3 + $0x98] sm:$0xff]
    %v164 = vld [vmem:[%s3 + $0xa0] sm:$0xff]
    %v165 = vld [vmem:[%s3 + $0xa8] sm:$0xff]
    %v166 = vld [vmem:[%s3 + $0xb0] sm:$0xff]
    %v167 = vld [vmem:[%s3 + $0xb8] sm:$0xff]
    %v168 = vld [vmem:[%s3 + $0xc0] sm:$0xff]
    %v169 = vld [vmem:[%s3 + $0xc8] sm:$0xff]
    %v170 = vld [vmem:[%s3 + $0xd0] sm:$0xff]
    %v171 = vld [vmem:[%s3 + $0xd8] sm:$0xff]
    %v172 = vld [vmem:[%s3 + $0xe0] sm:$0xff]
    %v173 = vld [vmem:[%s3 + $0xe8] sm:$0xff]
    %v174 = vld [vmem:[%s3 + $0xf0] sm:$0xff]
    %v175 = vld [vmem:[%s3 + $0xf8] sm:$0xff]
    %v176 = vld [vmem:[%s3 + $0x100] sm:$0xff]
    %v177 = vld [vmem:[%s3 + $0x108] sm:$0xff]
    %v178 = vld [vmem:[%s3 + $0x110] sm:$0xff]
    %v179 = vld [vmem:[%s3 + $0x118] sm:$0xff]
    %v180 = vld [vmem:[%s3 + $0x120] sm:$0xff]
    %v181 = vld [vmem:[%s3 + $0x128] sm:$0xff]
    %v182 = vld [vmem:[%s3 + $0x130] sm:$0xff]
    %v183 = vld [vmem:[%s3 + $0x138] sm:$0xff]
    %v184 = vld [vmem:[%s3 + $0x140] sm:$0xff]
    %v185 = vld [vmem:[%s3 + $0x148] sm:$0xff]
    %v186 = vld [vmem:[%s3 + $0x150] sm:$0xff]
    %v187 = vld [vmem:[%s3 + $0x158] sm:$0xff]
    %v188 = vld [vmem:[%s3 + $0x160] sm:$0xff]
    %v189 = vld [vmem:[%s3 + $0x168] sm:$0xff]
    %v190 = vld [vmem:[%s3 + $0x170] sm:$0xff]
    %v191 = vld [vmem:[%s3 + $0x178] sm:$0xff]
    %v192 = vld [vmem:[%s3 + $0x180] sm:$0xff]
    %v193 = vld [vmem:[%s3 + $0x188] sm:$0xff]
    %v194 = vld [vmem:[%s3 + $0x190] sm:$0xff]
    %v195 = vld [vmem:[%s3 + $0x198] sm:$0xff]
    %v196 = vld [vmem:[%s3 + $0x1a0] sm:$0xff]
    %v197 = vld [vmem:[%s3 + $0x1a8] sm:$0xff]
    %v198 = vld [vmem:[%s3 + $0x1b0] sm:$0xff]
    %v199 = vld [vmem:[%s3 + $0x1b8] sm:$0xff]
    %v200 = vld [vmem:[%s3 + $0x1c0] sm:$0xff]
    %v201 = vld [vmem:[%s3 + $0x1c8] sm:$0xff]
    %v202 = vld [vmem:[%s3 + $0x1d0] sm:$0xff]
    %v203 = vld [vmem:[%s3 + $0x1d8] sm:$0xff]
    %v204 = vld [vmem:[%s3 + $0x1e0] sm:$0xff]
    %v205 = vld [vmem:[%s3 + $0x1e8] sm:$0xff]
    %v206 = vld [vmem:[%s3 + $0x1f0] sm:$0xff]
    %v207 = vld [vmem:[%s3 + $0x1f8] sm:$0xff]
    %v208 = vld [vmem:[%s4] sm:$0xf]
    %v210 = vlaneseq
    %v211 = vshrl.u32 %v210, 7
    %v212 = vsub.s32 0, %v211
    %v213 = vrot.slane %v208, %v212
    %v214 = vlaneseq
    %v215 = vshrl.u32 %v214, 7
    %v216 = vsub.s32 1, %v215
    %v217 = vrot.slane %v208, %v216
    %v218 = vlaneseq
    %v219 = vshrl.u32 %v218, 7
    %v220 = vsub.s32 2, %v219
    %v221 = vrot.slane %v208, %v220
    %v222 = vlaneseq
    %v223 = vshrl.u32 %v222, 7
    %v224 = vsub.s32 3, %v223
    %v225 = vrot.slane %v208, %v224
    %v294 = vunpack.c.l.b16 %v144
    %v295 = vunpack.c.h.b16 %v144
    %v296 = vunpack.c.l.b16 %v145
    %v297 = vunpack.c.h.b16 %v145
    %v298 = vunpack.c.l.b16 %v146
    %v299 = vunpack.c.h.b16 %v146
    %v300 = vunpack.c.l.b16 %v147
    %v301 = vunpack.c.h.b16 %v147
    %v302 = vunpack.c.l.b16 %v148
    %v303 = vunpack.c.h.b16 %v148
    %v304 = vunpack.c.l.b16 %v149
    %v305 = vunpack.c.h.b16 %v149
    %v306 = vunpack.c.l.b16 %v150
    %v307 = vunpack.c.h.b16 %v150
    %v308 = vunpack.c.l.b16 %v151
    %v309 = vunpack.c.h.b16 %v151
    %v310 = vunpack.c.l.b16 %v152
    %v311 = vunpack.c.h.b16 %v152
    %v312 = vunpack.c.l.b16 %v153
    %v313 = vunpack.c.h.b16 %v153
    %v314 = vunpack.c.l.b16 %v154
    %v315 = vunpack.c.h.b16 %v154
    %v316 = vunpack.c.l.b16 %v155
    %v317 = vunpack.c.h.b16 %v155
    %v318 = vunpack.c.l.b16 %v156
    %v319 = vunpack.c.h.b16 %v156
    %v320 = vunpack.c.l.b16 %v157
    %v321 = vunpack.c.h.b16 %v157
    %v322 = vunpack.c.l.b16 %v158
    %v323 = vunpack.c.h.b16 %v158
    %v324 = vunpack.c.l.b16 %v159
    %v325 = vunpack.c.h.b16 %v159
    %v326 = vunpack.c.l.b16 %v160
    %v327 = vunpack.c.h.b16 %v160
    %v328 = vunpack.c.l.b16 %v161
    %v329 = vunpack.c.h.b16 %v161
    %v330 = vunpack.c.l.b16 %v162
    %v331 = vunpack.c.h.b16 %v162
    %v332 = vunpack.c.l.b16 %v163
    %v333 = vunpack.c.h.b16 %v163
    %v334 = vunpack.c.l.b16 %v164
    %v335 = vunpack.c.h.b16 %v164
    %v336 = vunpack.c.l.b16 %v165
    %v337 = vunpack.c.h.b16 %v165
    %v338 = vunpack.c.l.b16 %v166
    %v339 = vunpack.c.h.b16 %v166
    %v340 = vunpack.c.l.b16 %v167
    %v341 = vunpack.c.h.b16 %v167
    %v342 = vunpack.c.l.b16 %v168
    %v343 = vunpack.c.h.b16 %v168
    %v344 = vunpack.c.l.b16 %v169
    %v345 = vunpack.c.h.b16 %v169
    %v346 = vunpack.c.l.b16 %v170
    %v347 = vunpack.c.h.b16 %v170
    %v348 = vunpack.c.l.b16 %v171
    %v349 = vunpack.c.h.b16 %v171
    %v350 = vunpack.c.l.b16 %v172
    %v351 = vunpack.c.h.b16 %v172
    %v352 = vunpack.c.l.b16 %v173
    %v353 = vunpack.c.h.b16 %v173
    %v354 = vunpack.c.l.b16 %v174
    %v355 = vunpack.c.h.b16 %v174
    %v356 = vunpack.c.l.b16 %v175
    %v357 = vunpack.c.h.b16 %v175
    %v358 = vunpack.c.l.b16 %v176
    %v359 = vunpack.c.h.b16 %v176
    %v360 = vunpack.c.l.b16 %v177
    %v361 = vunpack.c.h.b16 %v177
    %v362 = vunpack.c.l.b16 %v178
    %v363 = vunpack.c.h.b16 %v178
    %v364 = vunpack.c.l.b16 %v179
    %v365 = vunpack.c.h.b16 %v179
    %v366 = vunpack.c.l.b16 %v180
    %v367 = vunpack.c.h.b16 %v180
    %v368 = vunpack.c.l.b16 %v181
    %v369 = vunpack.c.h.b16 %v181
    %v370 = vunpack.c.l.b16 %v182
    %v371 = vunpack.c.h.b16 %v182
    %v372 = vunpack.c.l.b16 %v183
    %v373 = vunpack.c.h.b16 %v183
    %v374 = vunpack.c.l.b16 %v184
    %v375 = vunpack.c.h.b16 %v184
    %v376 = vunpack.c.l.b16 %v185
    %v377 = vunpack.c.h.b16 %v185
    %v378 = vunpack.c.l.b16 %v186
    %v379 = vunpack.c.h.b16 %v186
    %v380 = vunpack.c.l.b16 %v187
    %v381 = vunpack.c.h.b16 %v187
    %v382 = vunpack.c.l.b16 %v188
    %v383 = vunpack.c.h.b16 %v188
    %v384 = vunpack.c.l.b16 %v189
    %v385 = vunpack.c.h.b16 %v189
    %v386 = vunpack.c.l.b16 %v190
    %v387 = vunpack.c.h.b16 %v190
    %v388 = vunpack.c.l.b16 %v191
    %v389 = vunpack.c.h.b16 %v191
    %v390 = vunpack.c.l.b16 %v192
    %v391 = vunpack.c.h.b16 %v192
    %v392 = vunpack.c.l.b16 %v193
    %v393 = vunpack.c.h.b16 %v193
    %v394 = vunpack.c.l.b16 %v194
    %v395 = vunpack.c.h.b16 %v194
    %v396 = vunpack.c.l.b16 %v195
    %v397 = vunpack.c.h.b16 %v195
    %v398 = vunpack.c.l.b16 %v196
    %v399 = vunpack.c.h.b16 %v196
    %v400 = vunpack.c.l.b16 %v197
    %v401 = vunpack.c.h.b16 %v197
    %v402 = vunpack.c.l.b16 %v198
    %v403 = vunpack.c.h.b16 %v198
    %v404 = vunpack.c.l.b16 %v199
    %v405 = vunpack.c.h.b16 %v199
    %v406 = vunpack.c.l.b16 %v200
    %v407 = vunpack.c.h.b16 %v200
    %v408 = vunpack.c.l.b16 %v201
    %v409 = vunpack.c.h.b16 %v201
    %v410 = vunpack.c.l.b16 %v202
    %v411 = vunpack.c.h.b16 %v202
    %v412 = vunpack.c.l.b16 %v203
    %v413 = vunpack.c.h.b16 %v203
    %v414 = vunpack.c.l.b16 %v204
    %v415 = vunpack.c.h.b16 %v204
    %v416 = vunpack.c.l.b16 %v205
    %v417 = vunpack.c.h.b16 %v205
    %v418 = vunpack.c.l.b16 %v206
    %v419 = vunpack.c.h.b16 %v206
    %v420 = vunpack.c.l.b16 %v207
    %v421 = vunpack.c.h.b16 %v207
    %v422 = vpack.c.b16 %v298, %v294
    %v423 = vpack.c.b16 %v299, %v295
    %v424 = vpack.c.b16 %v300, %v296
    %v425 = vpack.c.b16 %v301, %v297
    %v426 = vpack.c.b16 %v306, %v302
    %v427 = vpack.c.b16 %v307, %v303
    %v428 = vpack.c.b16 %v308, %v304
    %v429 = vpack.c.b16 %v309, %v305
    %v430 = vpack.c.b16 %v314, %v310
    %v431 = vpack.c.b16 %v315, %v311
    %v432 = vpack.c.b16 %v316, %v312
    %v433 = vpack.c.b16 %v317, %v313
    %v434 = vpack.c.b16 %v322, %v318
    %v435 = vpack.c.b16 %v323, %v319
    %v436 = vpack.c.b16 %v324, %v320
    %v437 = vpack.c.b16 %v325, %v321
    %v438 = vpack.c.b16 %v330, %v326
    %v439 = vpack.c.b16 %v331, %v327
    %v440 = vpack.c.b16 %v332, %v328
    %v441 = vpack.c.b16 %v333, %v329
    %v442 = vpack.c.b16 %v338, %v334
    %v443 = vpack.c.b16 %v339, %v335
    %v444 = vpack.c.b16 %v340, %v336
    %v445 = vpack.c.b16 %v341, %v337
    %v446 = vpack.c.b16 %v346, %v342
    %v447 = vpack.c.b16 %v347, %v343
    %v448 = vpack.c.b16 %v348, %v344
    %v449 = vpack.c.b16 %v349, %v345
    %v450 = vpack.c.b16 %v354, %v350
    %v451 = vpack.c.b16 %v355, %v351
    %v452 = vpack.c.b16 %v356, %v352
    %v453 = vpack.c.b16 %v357, %v353
    %v454 = vpack.c.b16 %v362, %v358
    %v455 = vpack.c.b16 %v363, %v359
    %v456 = vpack.c.b16 %v364, %v360
    %v457 = vpack.c.b16 %v365, %v361
    %v458 = vpack.c.b16 %v370, %v366
    %v459 = vpack.c.b16 %v371, %v367
    %v460 = vpack.c.b16 %v372, %v368
    %v461 = vpack.c.b16 %v373, %v369
    %v462 = vpack.c.b16 %v378, %v374
    %v463 = vpack.c.b16 %v379, %v375
    %v464 = vpack.c.b16 %v380, %v376
    %v465 = vpack.c.b16 %v381, %v377
    %v466 = vpack.c.b16 %v386, %v382
    %v467 = vpack.c.b16 %v387, %v383
    %v468 = vpack.c.b16 %v388, %v384
    %v469 = vpack.c.b16 %v389, %v385
    %v470 = vpack.c.b16 %v394, %v390
    %v471 = vpack.c.b16 %v395, %v391
    %v472 = vpack.c.b16 %v396, %v392
    %v473 = vpack.c.b16 %v397, %v393
    %v474 = vpack.c.b16 %v402, %v398
    %v475 = vpack.c.b16 %v403, %v399
    %v476 = vpack.c.b16 %v404, %v400
    %v477 = vpack.c.b16 %v405, %v401
    %v478 = vpack.c.b16 %v410, %v406
    %v479 = vpack.c.b16 %v411, %v407
    %v480 = vpack.c.b16 %v412, %v408
    %v481 = vpack.c.b16 %v413, %v409
    %v482 = vpack.c.b16 %v418, %v414
    %v483 = vpack.c.b16 %v419, %v415
    %v484 = vpack.c.b16 %v420, %v416
    %v485 = vpack.c.b16 %v421, %v417
    %550 = vmatprep.subr.bf16.mxu0 %v423
    %551 = vmatpush1.bf16.msra.mxu0 %v422
    %552 = vmatprep.subr.bf16.mxu0 %v427
    %553 = vmatpush1.bf16.msra.mxu0 %v426
    %554 = vmatprep.subr.bf16.mxu0 %v431
    %555 = vmatpush1.bf16.msra.mxu0 %v430
    %556 = vmatprep.subr.bf16.mxu0 %v435
    %557 = vmatpush1.bf16.msra.mxu0 %v434
    %558 = vmatprep.subr.bf16.mxu0 %v439
    %559 = vmatpush1.bf16.msra.mxu0 %v438
    %560 = vmatprep.subr.bf16.mxu0 %v443
    %561 = vmatpush1.bf16.msra.mxu0 %v442
    %562 = vmatprep.subr.bf16.mxu0 %v447
    %563 = vmatpush1.bf16.msra.mxu0 %v446
    %564 = vmatprep.subr.bf16.mxu0 %v451
    %565 = vmatpush1.bf16.msra.mxu0 %v450
    %566 = vmatprep.subr.bf16.mxu0 %v455
    %567 = vmatpush1.bf16.msra.mxu0 %v454
    %568 = vmatprep.subr.bf16.mxu0 %v459
    %569 = vmatpush1.bf16.msra.mxu0 %v458
    %570 = vmatprep.subr.bf16.mxu0 %v463
    %571 = vmatpush1.bf16.msra.mxu0 %v462
    %572 = vmatprep.subr.bf16.mxu0 %v467
    %573 = vmatpush1.bf16.msra.mxu0 %v466
    %574 = vmatprep.subr.bf16.mxu0 %v471
    %575 = vmatpush1.bf16.msra.mxu0 %v470
    %576 = vmatprep.subr.bf16.mxu0 %v475
    %577 = vmatpush1.bf16.msra.mxu0 %v474
    %578 = vmatprep.subr.bf16.mxu0 %v479
    %579 = vmatpush1.bf16.msra.mxu0 %v478
    %580 = vmatprep.subr.bf16.mxu0 %v483
    %581 = vmatpush1.bf16.msra.mxu0 %v482
    %582 = vmatprep.mubr.bf16.mxu0 %v141
    %583 = vmatmul.mubr.bf16.gmra.mrb[0].mxu0 %v140
    %v584 = vpop.f32.mrb[0].mxu0
    %v585 = vadd.f32 %v213, %v584
    %v586 = vpop.f32.mrb[0].mxu0
    %v587 = vadd.f32 %v217, %v586
    %v588 = vpop.f32.mrb[0].mxu0
    %v589 = vadd.f32 %v213, %v588
    %v590 = vpop.f32.mrb[0].mxu0
    %v591 = vadd.f32 %v217, %v590
    %592 = vmatprep.mubr.bf16.mxu0 %v143
    %593 = vmatmul.mubr.bf16.gmra.mrb[0].mxu0 %v142
    %v594 = vpop.f32.mrb[0].mxu0
    %v595 = vadd.f32 %v213, %v594
    %v596 = vpop.f32.mrb[0].mxu0
    %v597 = vadd.f32 %v217, %v596
    %v598 = vpop.f32.mrb[0].mxu0
    %v599 = vadd.f32 %v213, %v598
    %v600 = vpop.f32.mrb[0].mxu0
    %v601 = vadd.f32 %v217, %v600
    %602 = vdwg.mxu0
    %603 = vmatprep.subr.bf16.mxu0 %v425
    %604 = vmatpush1.bf16.msra.mxu0 %v424
    %605 = vmatprep.subr.bf16.mxu0 %v429
    %606 = vmatpush1.bf16.msra.mxu0 %v428
    %607 = vmatprep.subr.bf16.mxu0 %v433
    %608 = vmatpush1.bf16.msra.mxu0 %v432
    %609 = vmatprep.subr.bf16.mxu0 %v437
    %610 = vmatpush1.bf16.msra.mxu0 %v436
    %611 = vmatprep.subr.bf16.mxu0 %v441
    %612 = vmatpush1.bf16.msra.mxu0 %v440
    %613 = vmatprep.subr.bf16.mxu0 %v445
    %614 = vmatpush1.bf16.msra.mxu0 %v444
    %615 = vmatprep.subr.bf16.mxu0 %v449
    %616 = vmatpush1.bf16.msra.mxu0 %v448
    %617 = vmatprep.subr.bf16.mxu0 %v453
    %618 = vmatpush1.bf16.msra.mxu0 %v452
    %619 = vmatprep.subr.bf16.mxu0 %v457
    %620 = vmatpush1.bf16.msra.mxu0 %v456
    %621 = vmatprep.subr.bf16.mxu0 %v461
    %622 = vmatpush1.bf16.msra.mxu0 %v460
    %623 = vmatprep.subr.bf16.mxu0 %v465
    %624 = vmatpush1.bf16.msra.mxu0 %v464
    %625 = vmatprep.subr.bf16.mxu0 %v469
    %626 = vmatpush1.bf16.msra.mxu0 %v468
    %627 = vmatprep.subr.bf16.mxu0 %v473
    %628 = vmatpush1.bf16.msra.mxu0 %v472
    %629 = vmatprep.subr.bf16.mxu0 %v477
    %630 = vmatpush1.bf16.msra.mxu0 %v476
    %631 = vmatprep.subr.bf16.mxu0 %v481
    %632 = vmatpush1.bf16.msra.mxu0 %v480
    %633 = vmatprep.subr.bf16.mxu0 %v485
    %634 = vmatpush1.bf16.msra.mxu0 %v484
    %635 = vmatprep.mubr.bf16.mxu0 %v141
    %636 = vmatmul.mubr.bf16.gmra.mrb[0].mxu0 %v140
    %v637 = vpop.f32.mrb[0].mxu0
    %v638 = vadd.f32 %v221, %v637
    %v639 = vpop.f32.mrb[0].mxu0
    %v640 = vadd.f32 %v225, %v639
    %v641 = vpop.f32.mrb[0].mxu0
    %v642 = vadd.f32 %v221, %v641
    %v643 = vpop.f32.mrb[0].mxu0
    %v644 = vadd.f32 %v225, %v643
    %645 = vmatprep.mubr.bf16.mxu0 %v143
    %646 = vmatmul.mubr.bf16.gmra.mrb[0].mxu0 %v142
    %v647 = vpop.f32.mrb[0].mxu0
    %v648 = vadd.f32 %v221, %v647
    %v649 = vpop.f32.mrb[0].mxu0
    %v650 = vadd.f32 %v225, %v649
    %v651 = vpop.f32.mrb[0].mxu0
    %v652 = vadd.f32 %v221, %v651
    %v653 = vpop.f32.mrb[0].mxu0
    %v654 = vadd.f32 %v225, %v653
    %655 = vdwg.mxu0
    %v656 = vmax.f32 %v585, 0.0
    %v657 = vmax.f32 %v587, 0.0
    %v658 = vmax.f32 %v638, 0.0
    %v659 = vmax.f32 %v640, 0.0
    %v660 = vmax.f32 %v589, 0.0
    %v661 = vmax.f32 %v591, 0.0
    %v662 = vmax.f32 %v642, 0.0
    %v663 = vmax.f32 %v644, 0.0
    %v664 = vmax.f32 %v595, 0.0
    %v665 = vmax.f32 %v597, 0.0
    %v666 = vmax.f32 %v648, 0.0
    %v667 = vmax.f32 %v650, 0.0
    %v668 = vmax.f32 %v599, 0.0
    %v669 = vmax.f32 %v601, 0.0
    %v670 = vmax.f32 %v652, 0.0
    %v671 = vmax.f32 %v654, 0.0
    %v672 = vpack.c.bf16 %v660, %v656
    %v673 = vpack.c.bf16 %v661, %v657
    %v674 = vpack.c.bf16 %v662, %v658
    %v675 = vpack.c.bf16 %v663, %v659
    %v676 = vpack.c.bf16 %v668, %v664
    %v677 = vpack.c.bf16 %v669, %v665
    %v678 = vpack.c.bf16 %v670, %v666
    %v679 = vpack.c.bf16 %v671, %v667
    %v680 = vld [vmem:[%s5] sm:$0xf]
    %v681 = vld [vmem:[%s5 + $0x4] sm:$0xf]
    %v682 = vld [vmem:[%s5 + $0x8] sm:$0xf]
    %v683 = vld [vmem:[%s5 + $0xc] sm:$0xf]
    %v684 = vld [vmem:[%s5 + $0x10] sm:$0xf]
    %v685 = vld [vmem:[%s5 + $0x14] sm:$0xf]
    %v686 = vld [vmem:[%s5 + $0x18] sm:$0xf]
    %v687 = vld [vmem:[%s5 + $0x1c] sm:$0xf]
    %v688 = vld [vmem:[%s5 + $0x20] sm:$0xf]
    %v689 = vld [vmem:[%s5 + $0x24] sm:$0xf]
    %v690 = vld [vmem:[%s5 + $0x28] sm:$0xf]
    %v691 = vld [vmem:[%s5 + $0x2c] sm:$0xf]
    %v692 = vld [vmem:[%s5 + $0x30] sm:$0xf]
    %v693 = vld [vmem:[%s5 + $0x34] sm:$0xf]
    %v694 = vld [vmem:[%s5 + $0x38] sm:$0xf]
    %v695 = vld [vmem:[%s5 + $0x3c] sm:$0xf]
    %v696 = vld [vmem:[%s5 + $0x40] sm:$0xf]
    %v697 = vld [vmem:[%s5 + $0x44] sm:$0xf]
    %v698 = vld [vmem:[%s5 + $0x48] sm:$0xf]
    %v699 = vld [vmem:[%s5 + $0x4c] sm:$0xf]
    %v700 = vld [vmem:[%s5 + $0x50] sm:$0xf]
    %v701 = vld [vmem:[%s5 + $0x54] sm:$0xf]
    %v702 = vld [vmem:[%s5 + $0x58] sm:$0xf]
    %v703 = vld [vmem:[%s5 + $0x5c] sm:$0xf]
    %v704 = vld [vmem:[%s5 + $0x60] sm:$0xf]
    %v705 = vld [vmem:[%s5 + $0x64] sm:$0xf]
    %v706 = vld [vmem:[%s5 + $0x68] sm:$0xf]
    %v707 = vld [vmem:[%s5 + $0x6c] sm:$0xf]
    %v708 = vld [vmem:[%s5 + $0x70] sm:$0xf]
    %v709 = vld [vmem:[%s5 + $0x74] sm:$0xf]
    %v710 = vld [vmem:[%s5 + $0x78] sm:$0xf]
    %v711 = vld [vmem:[%s5 + $0x7c] sm:$0xf]
    %v712 = vld [vmem:[%s5 + $0x80] sm:$0xf]
    %v713 = vld [vmem:[%s5 + $0x84] sm:$0xf]
    %v714 = vld [vmem:[%s5 + $0x88] sm:$0xf]
    %v715 = vld [vmem:[%s5 + $0x8c] sm:$0xf]
    %v716 = vld [vmem:[%s5 + $0x90] sm:$0xf]
    %v717 = vld [vmem:[%s5 + $0x94] sm:$0xf]
    %v718 = vld [vmem:[%s5 + $0x98] sm:$0xf]
    %v719 = vld [vmem:[%s5 + $0x9c] sm:$0xf]
    %v720 = vld [vmem:[%s5 + $0xa0] sm:$0xf]
    %v721 = vld [vmem:[%s5 + $0xa4] sm:$0xf]
    %v722 = vld [vmem:[%s5 + $0xa8] sm:$0xf]
    %v723 = vld [vmem:[%s5 + $0xac] sm:$0xf]
    %v724 = vld [vmem:[%s5 + $0xb0] sm:$0xf]
    %v725 = vld [vmem:[%s5 + $0xb4] sm:$0xf]
    %v726 = vld [vmem:[%s5 + $0xb8] sm:$0xf]
    %v727 = vld [vmem:[%s5 + $0xbc] sm:$0xf]
    %v728 = vld [vmem:[%s5 + $0xc0] sm:$0xf]
    %v729 = vld [vmem:[%s5 + $0xc4] sm:$0xf]
    %v730 = vld [vmem:[%s5 + $0xc8] sm:$0xf]
    %v731 = vld [vmem:[%s5 + $0xcc] sm:$0xf]
    %v732 = vld [vmem:[%s5 + $0xd0] sm:$0xf]
    %v733 = vld [vmem:[%s5 + $0xd4] sm:$0xf]
    %v734 = vld [vmem:[%s5 + $0xd8] sm:$0xf]
    %v735 = vld [vmem:[%s5 + $0xdc] sm:$0xf]
    %v736 = vld [vmem:[%s5 + $0xe0] sm:$0xf]
    %v737 = vld [vmem:[%s5 + $0xe4] sm:$0xf]
    %v738 = vld [vmem:[%s5 + $0xe8] sm:$0xf]
    %v739 = vld [vmem:[%s5 + $0xec] sm:$0xf]
    %v740 = vld [vmem:[%s5 + $0xf0] sm:$0xf]
    %v741 = vld [vmem:[%s5 + $0xf4] sm:$0xf]
    %v742 = vld [vmem:[%s5 + $0xf8] sm:$0xf]
    %v743 = vld [vmem:[%s5 + $0xfc] sm:$0xf]
    %v744 = vld [vmem:[%s6] sm:$0x1]
    %v746 = vlaneseq
    %v747 = vshrl.u32 %v746, 7
    %v748 = vsub.s32 0, %v747
    %v749 = vrot.slane %v744, %v748
    %v815 = vunpack.c.l.b16 %v680
    %v816 = vunpack.c.l.b16 %v681
    %v817 = vunpack.c.l.b16 %v682
    %v818 = vunpack.c.l.b16 %v683
    %v819 = vunpack.c.l.b16 %v684
    %v820 = vunpack.c.l.b16 %v685
    %v821 = vunpack.c.l.b16 %v686
    %v822 = vunpack.c.l.b16 %v687
    %v823 = vunpack.c.l.b16 %v688
    %v824 = vunpack.c.l.b16 %v689
    %v825 = vunpack.c.l.b16 %v690
    %v826 = vunpack.c.l.b16 %v691
    %v827 = vunpack.c.l.b16 %v692
    %v828 = vunpack.c.l.b16 %v693
    %v829 = vunpack.c.l.b16 %v694
    %v830 = vunpack.c.l.b16 %v695
    %v831 = vunpack.c.l.b16 %v696
    %v832 = vunpack.c.l.b16 %v697
    %v833 = vunpack.c.l.b16 %v698
    %v834 = vunpack.c.l.b16 %v699
    %v835 = vunpack.c.l.b16 %v700
    %v836 = vunpack.c.l.b16 %v701
    %v837 = vunpack.c.l.b16 %v702
    %v838 = vunpack.c.l.b16 %v703
    %v839 = vunpack.c.l.b16 %v704
    %v840 = vunpack.c.l.b16 %v705
    %v841 = vunpack.c.l.b16 %v706
    %v842 = vunpack.c.l.b16 %v707
    %v843 = vunpack.c.l.b16 %v708
    %v844 = vunpack.c.l.b16 %v709
    %v845 = vunpack.c.l.b16 %v710
    %v846 = vunpack.c.l.b16 %v711
    %v847 = vunpack.c.l.b16 %v712
    %v848 = vunpack.c.l.b16 %v713
    %v849 = vunpack.c.l.b16 %v714
    %v850 = vunpack.c.l.b16 %v715
    %v851 = vunpack.c.l.b16 %v716
    %v852 = vunpack.c.l.b16 %v717
    %v853 = vunpack.c.l.b16 %v718
    %v854 = vunpack.c.l.b16 %v719
    %v855 = vunpack.c.l.b16 %v720
    %v856 = vunpack.c.l.b16 %v721
    %v857 = vunpack.c.l.b16 %v722
    %v858 = vunpack.c.l.b16 %v723
    %v859 = vunpack.c.l.b16 %v724
    %v860 = vunpack.c.l.b16 %v725
    %v861 = vunpack.c.l.b16 %v726
    %v862 = vunpack.c.l.b16 %v727
    %v863 = vunpack.c.l.b16 %v728
    %v864 = vunpack.c.l.b16 %v729
    %v865 = vunpack.c.l.b16 %v730
    %v866 = vunpack.c.l.b16 %v731
    %v867 = vunpack.c.l.b16 %v732
    %v868 = vunpack.c.l.b16 %v733
    %v869 = vunpack.c.l.b16 %v734
    %v870 = vunpack.c.l.b16 %v735
    %v871 = vunpack.c.l.b16 %v736
    %v872 = vunpack.c.l.b16 %v737
    %v873 = vunpack.c.l.b16 %v738
    %v874 = vunpack.c.l.b16 %v739
    %v875 = vunpack.c.l.b16 %v740
    %v876 = vunpack.c.l.b16 %v741
    %v877 = vunpack.c.l.b16 %v742
    %v878 = vunpack.c.l.b16 %v743
    %v879 = vpack.c.b16 %v816, %v815
    %v880 = vpack.c.b16 %v818, %v817
    %v881 = vpack.c.b16 %v820, %v819
    %v882 = vpack.c.b16 %v822, %v821
    %v883 = vpack.c.b16 %v824, %v823
    %v884 = vpack.c.b16 %v826, %v825
    %v885 = vpack.c.b16 %v828, %v827
    %v886 = vpack.c.b16 %v830, %v829
    %v887 = vpack.c.b16 %v832, %v831
    %v888 = vpack.c.b16 %v834, %v833
    %v889 = vpack.c.b16 %v836, %v835
    %v890 = vpack.c.b16 %v838, %v837
    %v891 = vpack.c.b16 %v840, %v839
    %v892 = vpack.c.b16 %v842, %v841
    %v893 = vpack.c.b16 %v844, %v843
    %v894 = vpack.c.b16 %v846, %v845
    %v895 = vpack.c.b16 %v848, %v847
    %v896 = vpack.c.b16 %v850, %v849
    %v897 = vpack.c.b16 %v852, %v851
    %v898 = vpack.c.b16 %v854, %v853
    %v899 = vpack.c.b16 %v856, %v855
    %v900 = vpack.c.b16 %v858, %v857
    %v901 = vpack.c.b16 %v860, %v859
    %v902 = vpack.c.b16 %v862, %v861
    %v903 = vpack.c.b16 %v864, %v863
    %v904 = vpack.c.b16 %v866, %v865
    %v905 = vpack.c.b16 %v868, %v867
    %v906 = vpack.c.b16 %v870, %v869
    %v907 = vpack.c.b16 %v872, %v871
    %v908 = vpack.c.b16 %v874, %v873
    %v909 = vpack.c.b16 %v876, %v875
    %v910 = vpack.c.b16 %v878, %v877
    %943 = vmatprep.subr.bf16.mxu0 0
    %944 = vmatpush1.bf16.msra.mxu0 %v879
    %945 = vmatprep.subr.bf16.mxu0 0
    %946 = vmatpush1.bf16.msra.mxu0 %v880
    %947 = vmatprep.subr.bf16.mxu0 0
    %948 = vmatpush1.bf16.msra.mxu0 %v881
    %949 = vmatprep.subr.bf16.mxu0 0
    %950 = vmatpush1.bf16.msra.mxu0 %v882
    %951 = vmatprep.subr.bf16.mxu0 0
    %952 = vmatpush1.bf16.msra.mxu0 %v883
    %953 = vmatprep.subr.bf16.mxu0 0
    %954 = vmatpush1.bf16.msra.mxu0 %v884
    %955 = vmatprep.subr.bf16.mxu0 0
    %956 = vmatpush1.bf16.msra.mxu0 %v885
    %957 = vmatprep.subr.bf16.mxu0 0
    %958 = vmatpush1.bf16.msra.mxu0 %v886
    %959 = vmatprep.subr.bf16.mxu0 0
    %960 = vmatpush1.bf16.msra.mxu0 %v887
    %961 = vmatprep.subr.bf16.mxu0 0
    %962 = vmatpush1.bf16.msra.mxu0 %v888
    %963 = vmatprep.subr.bf16.mxu0 0
    %964 = vmatpush1.bf16.msra.mxu0 %v889
    %965 = vmatprep.subr.bf16.mxu0 0
    %966 = vmatpush1.bf16.msra.mxu0 %v890
    %967 = vmatprep.subr.bf16.mxu0 0
    %968 = vmatpush1.bf16.msra.mxu0 %v891
    %969 = vmatprep.subr.bf16.mxu0 0
    %970 = vmatpush1.bf16.msra.mxu0 %v892
    %971 = vmatprep.subr.bf16.mxu0 0
    %972 = vmatpush1.bf16.msra.mxu0 %v893
    %973 = vmatprep.subr.bf16.mxu0 0
    %974 = vmatpush1.bf16.msra.mxu0 %v894
    %975 = vmatprep.mubr.bf16.mxu0 %v673
    %976 = vmatmul.mubr.bf16.gmra.mrb[0].mxu0 %v672
    %v977 = vpop.f32.mrb[0].mxu0
    %v978 = vadd.f32 %v749, %v977
    %v979 = vpop.f32.mrb[0].mxu0
    %v980 = vpop.f32.mrb[0].mxu0
    %v981 = vadd.f32 %v749, %v980
    %v982 = vpop.f32.mrb[0].mxu0
    %983 = vmatprep.mubr.bf16.mxu0 %v677
    %984 = vmatmul.mubr.bf16.gmra.mrb[0].mxu0 %v676
    %v985 = vpop.f32.mrb[0].mxu0
    %v986 = vadd.f32 %v749, %v985
    %v987 = vpop.f32.mrb[0].mxu0
    %v988 = vpop.f32.mrb[0].mxu0
    %v989 = vadd.f32 %v749, %v988
    %v990 = vpop.f32.mrb[0].mxu0
    %991 = vdwg.mxu0
    %992 = vmatprep.subr.bf16.mxu0 0
    %993 = vmatpush1.bf16.msra.mxu0 %v895
    %994 = vmatprep.subr.bf16.mxu0 0
    %995 = vmatpush1.bf16.msra.mxu0 %v896
    %996 = vmatprep.subr.bf16.mxu0 0
    %997 = vmatpush1.bf16.msra.mxu0 %v897
    %998 = vmatprep.subr.bf16.mxu0 0
    %999 = vmatpush1.bf16.msra.mxu0 %v898
    %1000 = vmatprep.subr.bf16.mxu0 0
    %1001 = vmatpush1.bf16.msra.mxu0 %v899
    %1002 = vmatprep.subr.bf16.mxu0 0
    %1003 = vmatpush1.bf16.msra.mxu0 %v900
    %1004 = vmatprep.subr.bf16.mxu0 0
    %1005 = vmatpush1.bf16.msra.mxu0 %v901
    %1006 = vmatprep.subr.bf16.mxu0 0
    %1007 = vmatpush1.bf16.msra.mxu0 %v902
    %1008 = vmatprep.subr.bf16.mxu0 0
    %1009 = vmatpush1.bf16.msra.mxu0 %v903
    %1010 = vmatprep.subr.bf16.mxu0 0
    %1011 = vmatpush1.bf16.msra.mxu0 %v904
    %1012 = vmatprep.subr.bf16.mxu0 0
    %1013 = vmatpush1.bf16.msra.mxu0 %v905
    %1014 = vmatprep.subr.bf16.mxu0 0
    %1015 = vmatpush1.bf16.msra.mxu0 %v906
    %1016 = vmatprep.subr.bf16.mxu0 0
    %1017 = vmatpush1.bf16.msra.mxu0 %v907
    %1018 = vmatprep.subr.bf16.mxu0 0
    %1019 = vmatpush1.bf16.msra.mxu0 %v908
    %1020 = vmatprep.subr.bf16.mxu0 0
    %1021 = vmatpush1.bf16.msra.mxu0 %v909
    %1022 = vmatprep.subr.bf16.mxu0 0
    %1023 = vmatpush1.bf16.msra.mxu0 %v910
    %1024 = vmatprep.mubr.bf16.mxu0 %v675
    %1025 = vmatmul.mubr.bf16.gmra.mrb[0].mxu0 %v674
    %v1026 = vpop.f32.mrb[0].mxu0
    %v1027 = vadd.f32 %v978, %v1026
    %v1028 = vpop.f32.mrb[0].mxu0
    %v1029 = vpop.f32.mrb[0].mxu0
    %v1030 = vadd.f32 %v981, %v1029
    %v1031 = vpop.f32.mrb[0].mxu0
    %1032 = vmatprep.mubr.bf16.mxu0 %v679
    %1033 = vmatmul.mubr.bf16.gmra.mrb[0].mxu0 %v678
    %v1034 = vpop.f32.mrb[0].mxu0
    %v1035 = vadd.f32 %v986, %v1034
    %v1036 = vpop.f32.mrb[0].mxu0
    %v1037 = vpop.f32.mrb[0].mxu0
    %v1038 = vadd.f32 %v989, %v1037
    %v1039 = vpop.f32.mrb[0].mxu0
    %1040 = vdwg.mxu0
    %v1041 = vmax.f32 %v1027, 0.0
    %v1042 = vmax.f32 %v1030, 0.0
    %v1043 = vmax.f32 %v1035, 0.0
    %v1044 = vmax.f32 %v1038, 0.0
    %v1045 = vpack.c.bf16 %v1042, %v1041
    %v1046 = vpack.c.bf16 %v1044, %v1043
    %v1047 = vld [vmem:[%s7] sm:$0xff]
    %v1048 = vld [vmem:[%s7 + $0x8] sm:$0xff]
    %v1049 = vld [vmem:[%s7 + $0x10] sm:$0xff]
    %v1050 = vld [vmem:[%s7 + $0x18] sm:$0xf]
    %v1051 = vld [vmem:[%s7 + $0x1c] sm:$0xff]
    %v1052 = vld [vmem:[%s7 + $0x24] sm:$0xff]
    %v1053 = vld [vmem:[%s7 + $0x2c] sm:$0xff]
    %v1054 = vld [vmem:[%s7 + $0x34] sm:$0xf]
    %v1055 = vld [vmem:[%s7 + $0x38] sm:$0xff]
    %v1056 = vld [vmem:[%s7 + $0x40] sm:$0xff]
    %v1057 = vld [vmem:[%s7 + $0x48] sm:$0xff]
    %v1058 = vld [vmem:[%s7 + $0x50] sm:$0xf]
    %v1059 = vld [vmem:[%s7 + $0x54] sm:$0xff]
    %v1060 = vld [vmem:[%s7 + $0x5c] sm:$0xff]
    %v1061 = vld [vmem:[%s7 + $0x64] sm:$0xff]
    %v1062 = vld [vmem:[%s7 + $0x6c] sm:$0xf]
    %v1063 = vld [vmem:[%s7 + $0x70] sm:$0xff]
    %v1064 = vld [vmem:[%s7 + $0x78] sm:$0xff]
    %v1065 = vld [vmem:[%s7 + $0x80] sm:$0xff]
    %v1066 = vld [vmem:[%s7 + $0x88] sm:$0xf]
    %v1067 = vld [vmem:[%s7 + $0x8c] sm:$0xff]
    %v1068 = vld [vmem:[%s7 + $0x94] sm:$0xff]
    %v1069 = vld [vmem:[%s7 + $0x9c] sm:$0xff]
    %v1070 = vld [vmem:[%s7 + $0xa4] sm:$0xf]
    %v1071 = vld [vmem:[%s7 + $0xa8] sm:$0xff]
    %v1072 = vld [vmem:[%s7 + $0xb0] sm:$0xff]
    %v1073 = vld [vmem:[%s7 + $0xb8] sm:$0xff]
    %v1074 = vld [vmem:[%s7 + $0xc0] sm:$0xf]
    %v1075 = vld [vmem:[%s7 + $0xc4] sm:$0xff]
    %v1076 = vld [vmem:[%s7 + $0xcc] sm:$0xff]
    %v1077 = vld [vmem:[%s7 + $0xd4] sm:$0xff]
    %v1078 = vld [vmem:[%s7 + $0xdc] sm:$0xf]
    %v1079 = vld [vmem:[%s7 + $0xe0] sm:$0xff]
    %v1080 = vld [vmem:[%s7 + $0xe8] sm:$0xff]
    %v1081 = vld [vmem:[%s7 + $0xf0] sm:$0xff]
    %v1082 = vld [vmem:[%s7 + $0xf8] sm:$0xf]
    %v1083 = vld [vmem:[%s7 + $0xfc] sm:$0xff]
    %v1084 = vld [vmem:[%s7 + $0x104] sm:$0xff]
    %v1085 = vld [vmem:[%s7 + $0x10c] sm:$0xff]
    %v1086 = vld [vmem:[%s7 + $0x114] sm:$0xf]
    %v1087 = vld [vmem:[%s7 + $0x118] sm:$0xff]
    %v1088 = vld [vmem:[%s7 + $0x120] sm:$0xff]
    %v1089 = vld [vmem:[%s7 + $0x128] sm:$0xff]
    %v1090 = vld [vmem:[%s7 + $0x130] sm:$0xf]
    %v1091 = vld [vmem:[%s7 + $0x134] sm:$0xff]
    %v1092 = vld [vmem:[%s7 + $0x13c] sm:$0xff]
    %v1093 = vld [vmem:[%s7 + $0x144] sm:$0xff]
    %v1094 = vld [vmem:[%s7 + $0x14c] sm:$0xf]
    %v1095 = vld [vmem:[%s7 + $0x150] sm:$0xff]
    %v1096 = vld [vmem:[%s7 + $0x158] sm:$0xff]
    %v1097 = vld [vmem:[%s7 + $0x160] sm:$0xff]
    %v1098 = vld [vmem:[%s7 + $0x168] sm:$0xf]
    %v1099 = vld [vmem:[%s7 + $0x16c] sm:$0xff]
    %v1100 = vld [vmem:[%s7 + $0x174] sm:$0xff]
    %v1101 = vld [vmem:[%s7 + $0x17c] sm:$0xff]
    %v1102 = vld [vmem:[%s7 + $0x184] sm:$0xf]
    %v1103 = vld [vmem:[%s7 + $0x188] sm:$0xff]
    %v1104 = vld [vmem:[%s7 + $0x190] sm:$0xff]
    %v1105 = vld [vmem:[%s7 + $0x198] sm:$0xff]
    %v1106 = vld [vmem:[%s7 + $0x1a0] sm:$0xf]
    %v1107 = vld [vmem:[%s7 + $0x1a4] sm:$0xff]
    %v1108 = vld [vmem:[%s7 + $0x1ac] sm:$0xff]
    %v1109 = vld [vmem:[%s7 + $0x1b4] sm:$0xff]
    %v1110 = vld [vmem:[%s7 + $0x1bc] sm:$0xf]
    %v1111 = vld [vmem:[%s8] sm:$0xff]
    %v1113 = vlaneseq
    %v1114 = vshrl.u32 %v1113, 7
    %v1115 = vsub.s32 0, %v1114
    %v1116 = vrot.slane %v1111, %v1115
    %v1117 = vlaneseq
    %v1118 = vshrl.u32 %v1117, 7
    %v1119 = vsub.s32 1, %v1118
    %v1120 = vrot.slane %v1111, %v1119
    %v1121 = vlaneseq
    %v1122 = vshrl.u32 %v1121, 7
    %v1123 = vsub.s32 2, %v1122
    %v1124 = vrot.slane %v1111, %v1123
    %v1125 = vlaneseq
    %v1126 = vshrl.u32 %v1125, 7
    %v1127 = vsub.s32 3, %v1126
    %v1128 = vrot.slane %v1111, %v1127
    %v1129 = vlaneseq
    %v1130 = vshrl.u32 %v1129, 7
    %v1131 = vsub.s32 4, %v1130
    %v1132 = vrot.slane %v1111, %v1131
    %v1133 = vlaneseq
    %v1134 = vshrl.u32 %v1133, 7
    %v1135 = vsub.s32 5, %v1134
    %v1136 = vrot.slane %v1111, %v1135
    %v1137 = vlaneseq
    %v1138 = vshrl.u32 %v1137, 7
    %v1139 = vsub.s32 6, %v1138
    %v1140 = vrot.slane %v1111, %v1139
    %v1212 = vunpack.c.l.b16 %v1047
    %v1213 = vunpack.c.h.b16 %v1047
    %v1214 = vunpack.c.l.b16 %v1048
    %v1215 = vunpack.c.h.b16 %v1048
    %v1216 = vunpack.c.l.b16 %v1049
    %v1217 = vunpack.c.h.b16 %v1049
    %v1218 = vunpack.c.l.b16 %v1050
    %v1219 = vunpack.c.l.b16 %v1051
    %v1220 = vunpack.c.h.b16 %v1051
    %v1221 = vunpack.c.l.b16 %v1052
    %v1222 = vunpack.c.h.b16 %v1052
    %v1223 = vunpack.c.l.b16 %v1053
    %v1224 = vunpack.c.h.b16 %v1053
    %v1225 = vunpack.c.l.b16 %v1054
    %v1226 = vunpack.c.l.b16 %v1055
    %v1227 = vunpack.c.h.b16 %v1055
    %v1228 = vunpack.c.l.b16 %v1056
    %v1229 = vunpack.c.h.b16 %v1056
    %v1230 = vunpack.c.l.b16 %v1057
    %v1231 = vunpack.c.h.b16 %v1057
    %v1232 = vunpack.c.l.b16 %v1058
    %v1233 = vunpack.c.l.b16 %v1059
    %v1234 = vunpack.c.h.b16 %v1059
    %v1235 = vunpack.c.l.b16 %v1060
    %v1236 = vunpack.c.h.b16 %v1060
    %v1237 = vunpack.c.l.b16 %v1061
    %v1238 = vunpack.c.h.b16 %v1061
    %v1239 = vunpack.c.l.b16 %v1062
    %v1240 = vunpack.c.l.b16 %v1063
    %v1241 = vunpack.c.h.b16 %v1063
    %v1242 = vunpack.c.l.b16 %v1064
    %v1243 = vunpack.c.h.b16 %v1064
    %v1244 = vunpack.c.l.b16 %v1065
    %v1245 = vunpack.c.h.b16 %v1065
    %v1246 = vunpack.c.l.b16 %v1066
    %v1247 = vunpack.c.l.b16 %v1067
    %v1248 = vunpack.c.h.b16 %v1067
    %v1249 = vunpack.c.l.b16 %v1068
    %v1250 = vunpack.c.h.b16 %v1068
    %v1251 = vunpack.c.l.b16 %v1069
    %v1252 = vunpack.c.h.b16 %v1069
    %v1253 = vunpack.c.l.b16 %v1070
    %v1254 = vunpack.c.l.b16 %v1071
    %v1255 = vunpack.c.h.b16 %v1071
    %v1256 = vunpack.c.l.b16 %v1072
    %v1257 = vunpack.c.h.b16 %v1072
    %v1258 = vunpack.c.l.b16 %v1073
    %v1259 = vunpack.c.h.b16 %v1073
    %v1260 = vunpack.c.l.b16 %v1074
    %v1261 = vunpack.c.l.b16 %v1075
    %v1262 = vunpack.c.h.b16 %v1075
    %v1263 = vunpack.c.l.b16 %v1076
    %v1264 = vunpack.c.h.b16 %v1076
    %v1265 = vunpack.c.l.b16 %v1077
    %v1266 = vunpack.c.h.b16 %v1077
    %v1267 = vunpack.c.l.b16 %v1078
    %v1268 = vunpack.c.l.b16 %v1079
    %v1269 = vunpack.c.h.b16 %v1079
    %v1270 = vunpack.c.l.b16 %v1080
    %v1271 = vunpack.c.h.b16 %v1080
    %v1272 = vunpack.c.l.b16 %v1081
    %v1273 = vunpack.c.h.b16 %v1081
    %v1274 = vunpack.c.l.b16 %v1082
    %v1275 = vunpack.c.l.b16 %v1083
    %v1276 = vunpack.c.h.b16 %v1083
    %v1277 = vunpack.c.l.b16 %v1084
    %v1278 = vunpack.c.h.b16 %v1084
    %v1279 = vunpack.c.l.b16 %v1085
    %v1280 = vunpack.c.h.b16 %v1085
    %v1281 = vunpack.c.l.b16 %v1086
    %v1282 = vunpack.c.l.b16 %v1087
    %v1283 = vunpack.c.h.b16 %v1087
    %v1284 = vunpack.c.l.b16 %v1088
    %v1285 = vunpack.c.h.b16 %v1088
    %v1286 = vunpack.c.l.b16 %v1089
    %v1287 = vunpack.c.h.b16 %v1089
    %v1288 = vunpack.c.l.b16 %v1090
    %v1289 = vunpack.c.l.b16 %v1091
    %v1290 = vunpack.c.h.b16 %v1091
    %v1291 = vunpack.c.l.b16 %v1092
    %v1292 = vunpack.c.h.b16 %v1092
    %v1293 = vunpack.c.l.b16 %v1093
    %v1294 = vunpack.c.h.b16 %v1093
    %v1295 = vunpack.c.l.b16 %v1094
    %v1296 = vunpack.c.l.b16 %v1095
    %v1297 = vunpack.c.h.b16 %v1095
    %v1298 = vunpack.c.l.b16 %v1096
    %v1299 = vunpack.c.h.b16 %v1096
    %v1300 = vunpack.c.l.b16 %v1097
    %v1301 = vunpack.c.h.b16 %v1097
    %v1302 = vunpack.c.l.b16 %v1098
    %v1303 = vunpack.c.l.b16 %v1099
    %v1304 = vunpack.c.h.b16 %v1099
    %v1305 = vunpack.c.l.b16 %v1100
    %v1306 = vunpack.c.h.b16 %v1100
    %v1307 = vunpack.c.l.b16 %v1101
    %v1308 = vunpack.c.h.b16 %v1101
    %v1309 = vunpack.c.l.b16 %v1102
    %v1310 = vunpack.c.l.b16 %v1103
    %v1311 = vunpack.c.h.b16 %v1103
    %v1312 = vunpack.c.l.b16 %v1104
    %v1313 = vunpack.c.h.b16 %v1104
    %v1314 = vunpack.c.l.b16 %v1105
    %v1315 = vunpack.c.h.b16 %v1105
    %v1316 = vunpack.c.l.b16 %v1106
    %v1317 = vunpack.c.l.b16 %v1107
    %v1318 = vunpack.c.h.b16 %v1107
    %v1319 = vunpack.c.l.b16 %v1108
    %v1320 = vunpack.c.h.b16 %v1108
    %v1321 = vunpack.c.l.b16 %v1109
    %v1322 = vunpack.c.h.b16 %v1109
    %v1323 = vunpack.c.l.b16 %v1110
    %v1324 = vpack.c.b16 %v1219, %v1212
    %v1325 = vpack.c.b16 %v1220, %v1213
    %v1326 = vpack.c.b16 %v1221, %v1214
    %v1327 = vpack.c.b16 %v1222, %v1215
    %v1328 = vpack.c.b16 %v1223, %v1216
    %v1329 = vpack.c.b16 %v1224, %v1217
    %v1330 = vpack.c.b16 %v1225, %v1218
    %v1331 = vpack.c.b16 %v1233, %v1226
    %v1332 = vpack.c.b16 %v1234, %v1227
    %v1333 = vpack.c.b16 %v1235, %v1228
    %v1334 = vpack.c.b16 %v1236, %v1229
    %v1335 = vpack.c.b16 %v1237, %v1230
    %v1336 = vpack.c.b16 %v1238, %v1231
    %v1337 = vpack.c.b16 %v1239, %v1232
    %v1338 = vpack.c.b16 %v1247, %v1240
    %v1339 = vpack.c.b16 %v1248, %v1241
    %v1340 = vpack.c.b16 %v1249, %v1242
    %v1341 = vpack.c.b16 %v1250, %v1243
    %v1342 = vpack.c.b16 %v1251, %v1244
    %v1343 = vpack.c.b16 %v1252, %v1245
    %v1344 = vpack.c.b16 %v1253, %v1246
    %v1345 = vpack.c.b16 %v1261, %v1254
    %v1346 = vpack.c.b16 %v1262, %v1255
    %v1347 = vpack.c.b16 %v1263, %v1256
    %v1348 = vpack.c.b16 %v1264, %v1257
    %v1349 = vpack.c.b16 %v1265, %v1258
    %v1350 = vpack.c.b16 %v1266, %v1259
    %v1351 = vpack.c.b16 %v1267, %v1260
    %v1352 = vpack.c.b16 %v1275, %v1268
    %v1353 = vpack.c.b16 %v1276, %v1269
    %v1354 = vpack.c.b16 %v1277, %v1270
    %v1355 = vpack.c.b16 %v1278, %v1271
    %v1356 = vpack.c.b16 %v1279, %v1272
    %v1357 = vpack.c.b16 %v1280, %v1273
    %v1358 = vpack.c.b16 %v1281, %v1274
    %v1359 = vpack.c.b16 %v1289, %v1282
    %v1360 = vpack.c.b16 %v1290, %v1283
    %v1361 = vpack.c.b16 %v1291, %v1284
    %v1362 = vpack.c.b16 %v1292, %v1285
    %v1363 = vpack.c.b16 %v1293, %v1286
    %v1364 = vpack.c.b16 %v1294, %v1287
    %v1365 = vpack.c.b16 %v1295, %v1288
    %v1366 = vpack.c.b16 %v1303, %v1296
    %v1367 = vpack.c.b16 %v1304, %v1297
    %v1368 = vpack.c.b16 %v1305, %v1298
    %v1369 = vpack.c.b16 %v1306, %v1299
    %v1370 = vpack.c.b16 %v1307, %v1300
    %v1371 = vpack.c.b16 %v1308, %v1301
    %v1372 = vpack.c.b16 %v1309, %v1302
    %v1373 = vpack.c.b16 %v1317, %v1310
    %v1374 = vpack.c.b16 %v1318, %v1311
    %v1375 = vpack.c.b16 %v1319, %v1312
    %v1376 = vpack.c.b16 %v1320, %v1313
    %v1377 = vpack.c.b16 %v1321, %v1314
    %v1378 = vpack.c.b16 %v1322, %v1315
    %v1379 = vpack.c.b16 %v1323, %v1316
    %1436 = vmatprep.subr.bf16.mxu0 %v1325
    %1437 = vmatpush1.bf16.msra.mxu0 %v1324
    %1438 = vmatprep.subr.bf16.mxu0 %v1332
    %1439 = vmatpush1.bf16.msra.mxu0 %v1331
    %1440 = vmatprep.subr.bf16.mxu0 %v1339
    %1441 = vmatpush1.bf16.msra.mxu0 %v1338
    %1442 = vmatprep.subr.bf16.mxu0 %v1346
    %1443 = vmatpush1.bf16.msra.mxu0 %v1345
    %1444 = vmatprep.subr.bf16.mxu0 %v1353
    %1445 = vmatpush1.bf16.msra.mxu0 %v1352
    %1446 = vmatprep.subr.bf16.mxu0 %v1360
    %1447 = vmatpush1.bf16.msra.mxu0 %v1359
    %1448 = vmatprep.subr.bf16.mxu0 %v1367
    %1449 = vmatpush1.bf16.msra.mxu0 %v1366
    %1450 = vmatprep.subr.bf16.mxu0 %v1374
    %1451 = vmatpush1.bf16.msra.mxu0 %v1373
    %1452 = vmatprep.subr.bf16.mxu0 0
    %1453 = vmatpush1.bf16.msra.mxu0 0
    %1454 = vmatprep.subr.bf16.mxu0 0
    %1455 = vmatpush1.bf16.msra.mxu0 0
    %1456 = vmatprep.subr.bf16.mxu0 0
    %1457 = vmatpush1.bf16.msra.mxu0 0
    %1458 = vmatprep.subr.bf16.mxu0 0
    %1459 = vmatpush1.bf16.msra.mxu0 0
    %1460 = vmatprep.subr.bf16.mxu0 0
    %1461 = vmatpush1.bf16.msra.mxu0 0
    %1462 = vmatprep.subr.bf16.mxu0 0
    %1463 = vmatpush1.bf16.msra.mxu0 0
    %1464 = vmatprep.subr.bf16.mxu0 0
    %1465 = vmatpush1.bf16.msra.mxu0 0
    %1466 = vmatprep.subr.bf16.mxu0 0
    %1467 = vmatpush1.bf16.msra.mxu0 0
    %1468 = vmatprep.mubr.bf16.mxu0 0
    %1469 = vmatmul.mubr.bf16.gmra.mrb[0].mxu0 %v1045
    %v1470 = vpop.f32.mrb[0].mxu0
    %v1471 = vadd.f32 %v1116, %v1470
    %v1472 = vpop.f32.mrb[0].mxu0
    %v1473 = vadd.f32 %v1120, %v1472
    %v1474 = vpop.f32.mrb[0].mxu0
    %v1475 = vadd.f32 %v1116, %v1474
    %v1476 = vpop.f32.mrb[0].mxu0
    %v1477 = vadd.f32 %v1120, %v1476
    %1478 = vmatprep.mubr.bf16.mxu0 0
    %1479 = vmatmul.mubr.bf16.gmra.mrb[0].mxu0 %v1046
    %v1480 = vpop.f32.mrb[0].mxu0
    %v1481 = vadd.f32 %v1116, %v1480
    %v1482 = vpop.f32.mrb[0].mxu0
    %v1483 = vadd.f32 %v1120, %v1482
    %v1484 = vpop.f32.mrb[0].mxu0
    %v1485 = vadd.f32 %v1116, %v1484
    %v1486 = vpop.f32.mrb[0].mxu0
    %v1487 = vadd.f32 %v1120, %v1486
    %1488 = vdwg.mxu0
    %1489 = vmatprep.subr.bf16.mxu0 %v1327
    %1490 = vmatpush1.bf16.msra.mxu0 %v1326
    %1491 = vmatprep.subr.bf16.mxu0 %v1334
    %1492 = vmatpush1.bf16.msra.mxu0 %v1333
    %1493 = vmatprep.subr.bf16.mxu0 %v1341
    %1494 = vmatpush1.bf16.msra.mxu0 %v1340
    %1495 = vmatprep.subr.bf16.mxu0 %v1348
    %1496 = vmatpush1.bf16.msra.mxu0 %v1347
    %1497 = vmatprep.subr.bf16.mxu0 %v1355
    %1498 = vmatpush1.bf16.msra.mxu0 %v1354
    %1499 = vmatprep.subr.bf16.mxu0 %v1362
    %1500 = vmatpush1.bf16.msra.mxu0 %v1361
    %1501 = vmatprep.subr.bf16.mxu0 %v1369
    %1502 = vmatpush1.bf16.msra.mxu0 %v1368
    %1503 = vmatprep.subr.bf16.mxu0 %v1376
    %1504 = vmatpush1.bf16.msra.mxu0 %v1375
    %1505 = vmatprep.subr.bf16.mxu0 0
    %1506 = vmatpush1.bf16.msra.mxu0 0
    %1507 = vmatprep.subr.bf16.mxu0 0
    %1508 = vmatpush1.bf16.msra.mxu0 0
    %1509 = vmatprep.subr.bf16.mxu0 0
    %1510 = vmatpush1.bf16.msra.mxu0 0
    %1511 = vmatprep.subr.bf16.mxu0 0
    %1512 = vmatpush1.bf16.msra.mxu0 0
    %1513 = vmatprep.subr.bf16.mxu0 0
    %1514 = vmatpush1.bf16.msra.mxu0 0
    %1515 = vmatprep.subr.bf16.mxu0 0
    %1516 = vmatpush1.bf16.msra.mxu0 0
    %1517 = vmatprep.subr.bf16.mxu0 0
    %1518 = vmatpush1.bf16.msra.mxu0 0
    %1519 = vmatprep.subr.bf16.mxu0 0
    %1520 = vmatpush1.bf16.msra.mxu0 0
    %1521 = vmatprep.mubr.bf16.mxu0 0
    %1522 = vmatmul.mubr.bf16.gmra.mrb[0].mxu0 %v1045
    %v1523 = vpop.f32.mrb[0].mxu0
    %v1524 = vadd.f32 %v1124, %v1523
    %v1525 = vpop.f32.mrb[0].mxu0
    %v1526 = vadd.f32 %v1128, %v1525
    %v1527 = vpop.f32.mrb[0].mxu0
    %v1528 = vadd.f32 %v1124, %v1527
    %v1529 = vpop.f32.mrb[0].mxu0
    %v1530 = vadd.f32 %v1128, %v1529
    %1531 = vmatprep.mubr.bf16.mxu0 0
    %1532 = vmatmul.mubr.bf16.gmra.mrb[0].mxu0 %v1046
    %v1533 = vpop.f32.mrb[0].mxu0
    %v1534 = vadd.f32 %v1124, %v1533
    %v1535 = vpop.f32.mrb[0].mxu0
    %v1536 = vadd.f32 %v1128, %v1535
    %v1537 = vpop.f32.mrb[0].mxu0
    %v1538 = vadd.f32 %v1124, %v1537
    %v1539 = vpop.f32.mrb[0].mxu0
    %v1540 = vadd.f32 %v1128, %v1539
    %1541 = vdwg.mxu0
    %1542 = vmatprep.subr.bf16.mxu0 %v1329
    %1543 = vmatpush1.bf16.msra.mxu0 %v1328
    %1544 = vmatprep.subr.bf16.mxu0 %v1336
    %1545 = vmatpush1.bf16.msra.mxu0 %v1335
    %1546 = vmatprep.subr.bf16.mxu0 %v1343
    %1547 = vmatpush1.bf16.msra.mxu0 %v1342
    %1548 = vmatprep.subr.bf16.mxu0 %v1350
    %1549 = vmatpush1.bf16.msra.mxu0 %v1349
    %1550 = vmatprep.subr.bf16.mxu0 %v1357
    %1551 = vmatpush1.bf16.msra.mxu0 %v1356
    %1552 = vmatprep.subr.bf16.mxu0 %v1364
    %1553 = vmatpush1.bf16.msra.mxu0 %v1363
    %1554 = vmatprep.subr.bf16.mxu0 %v1371
    %1555 = vmatpush1.bf16.msra.mxu0 %v1370
    %1556 = vmatprep.subr.bf16.mxu0 %v1378
    %1557 = vmatpush1.bf16.msra.mxu0 %v1377
    %1558 = vmatprep.subr.bf16.mxu0 0
    %1559 = vmatpush1.bf16.msra.mxu0 0
    %1560 = vmatprep.subr.bf16.mxu0 0
    %1561 = vmatpush1.bf16.msra.mxu0 0
    %1562 = vmatprep.subr.bf16.mxu0 0
    %1563 = vmatpush1.bf16.msra.mxu0 0
    %1564 = vmatprep.subr.bf16.mxu0 0
    %1565 = vmatpush1.bf16.msra.mxu0 0
    %1566 = vmatprep.subr.bf16.mxu0 0
    %1567 = vmatpush1.bf16.msra.mxu0 0
    %1568 = vmatprep.subr.bf16.mxu0 0
    %1569 = vmatpush1.bf16.msra.mxu0 0
    %1570 = vmatprep.subr.bf16.mxu0 0
    %1571 = vmatpush1.bf16.msra.mxu0 0
    %1572 = vmatprep.subr.bf16.mxu0 0
    %1573 = vmatpush1.bf16.msra.mxu0 0
    %1574 = vmatprep.mubr.bf16.mxu0 0
    %1575 = vmatmul.mubr.bf16.gmra.mrb[0].mxu0 %v1045
    %v1576 = vpop.f32.mrb[0].mxu0
    %v1577 = vadd.f32 %v1132, %v1576
    %v1578 = vpop.f32.mrb[0].mxu0
    %v1579 = vadd.f32 %v1136, %v1578
    %v1580 = vpop.f32.mrb[0].mxu0
    %v1581 = vadd.f32 %v1132, %v1580
    %v1582 = vpop.f32.mrb[0].mxu0
    %v1583 = vadd.f32 %v1136, %v1582
    %1584 = vmatprep.mubr.bf16.mxu0 0
    %1585 = vmatmul.mubr.bf16.gmra.mrb[0].mxu0 %v1046
    %v1586 = vpop.f32.mrb[0].mxu0
    %v1587 = vadd.f32 %v1132, %v1586
    %v1588 = vpop.f32.mrb[0].mxu0
    %v1589 = vadd.f32 %v1136, %v1588
    %v1590 = vpop.f32.mrb[0].mxu0
    %v1591 = vadd.f32 %v1132, %v1590
    %v1592 = vpop.f32.mrb[0].mxu0
    %v1593 = vadd.f32 %v1136, %v1592
    %1594 = vdwg.mxu0
    %1595 = vmatprep.subr.bf16.mxu0 0
    %1596 = vmatpush1.bf16.msra.mxu0 %v1330
    %1597 = vmatprep.subr.bf16.mxu0 0
    %1598 = vmatpush1.bf16.msra.mxu0 %v1337
    %1599 = vmatprep.subr.bf16.mxu0 0
    %1600 = vmatpush1.bf16.msra.mxu0 %v1344
    %1601 = vmatprep.subr.bf16.mxu0 0
    %1602 = vmatpush1.bf16.msra.mxu0 %v1351
    %1603 = vmatprep.subr.bf16.mxu0 0
    %1604 = vmatpush1.bf16.msra.mxu0 %v1358
    %1605 = vmatprep.subr.bf16.mxu0 0
    %1606 = vmatpush1.bf16.msra.mxu0 %v1365
    %1607 = vmatprep.subr.bf16.mxu0 0
    %1608 = vmatpush1.bf16.msra.mxu0 %v1372
    %1609 = vmatprep.subr.bf16.mxu0 0
    %1610 = vmatpush1.bf16.msra.mxu0 %v1379
    %1611 = vmatprep.subr.bf16.mxu0 0
    %1612 = vmatpush1.bf16.msra.mxu0 0
    %1613 = vmatprep.subr.bf16.mxu0 0
    %1614 = vmatpush1.bf16.msra.mxu0 0
    %1615 = vmatprep.subr.bf16.mxu0 0
    %1616 = vmatpush1.bf16.msra.mxu0 0
    %1617 = vmatprep.subr.bf16.mxu0 0
    %1618 = vmatpush1.bf16.msra.mxu0 0
    %1619 = vmatprep.subr.bf16.mxu0 0
    %1620 = vmatpush1.bf16.msra.mxu0 0
    %1621 = vmatprep.subr.bf16.mxu0 0
    %1622 = vmatpush1.bf16.msra.mxu0 0
    %1623 = vmatprep.subr.bf16.mxu0 0
    %1624 = vmatpush1.bf16.msra.mxu0 0
    %1625 = vmatprep.subr.bf16.mxu0 0
    %1626 = vmatpush1.bf16.msra.mxu0 0
    %1627 = vmatprep.mubr.bf16.mxu0 0
    %1628 = vmatmul.mubr.bf16.gmra.mrb[0].mxu0 %v1045
    %v1629 = vpop.f32.mrb[0].mxu0
    %v1630 = vadd.f32 %v1140, %v1629
    %v1631 = vpop.f32.mrb[0].mxu0
    %v1632 = vpop.f32.mrb[0].mxu0
    %v1633 = vadd.f32 %v1140, %v1632
    %v1634 = vpop.f32.mrb[0].mxu0
    %1635 = vmatprep.mubr.bf16.mxu0 0
    %1636 = vmatmul.mubr.bf16.gmra.mrb[0].mxu0 %v1046
    %v1637 = vpop.f32.mrb[0].mxu0
    %v1638 = vadd.f32 %v1140, %v1637
    %v1639 = vpop.f32.mrb[0].mxu0
    %v1640 = vpop.f32.mrb[0].mxu0
    %v1641 = vadd.f32 %v1140, %v1640
    %v1642 = vpop.f32.mrb[0].mxu0
    %1643 = vdwg.mxu0
    %v1644 = vxor.u32 %v1471, 2147483648
    %v1645 = vxor.u32 %v1473, 2147483648
    %v1646 = vxor.u32 %v1524, 2147483648
    %v1647 = vxor.u32 %v1526, 2147483648
    %v1648 = vxor.u32 %v1577, 2147483648
    %v1649 = vxor.u32 %v1579, 2147483648
    %v1650 = vxor.u32 %v1630, 2147483648
    %v1651 = vxor.u32 %v1475, 2147483648
    %v1652 = vxor.u32 %v1477, 2147483648
    %v1653 = vxor.u32 %v1528, 2147483648
    %v1654 = vxor.u32 %v1530, 2147483648
    %v1655 = vxor.u32 %v1581, 2147483648
    %v1656 = vxor.u32 %v1583, 2147483648
    %v1657 = vxor.u32 %v1633, 2147483648
    %v1658 = vxor.u32 %v1481, 2147483648
    %v1659 = vxor.u32 %v1483, 2147483648
    %v1660 = vxor.u32 %v1534, 2147483648
    %v1661 = vxor.u32 %v1536, 2147483648
    %v1662 = vxor.u32 %v1587, 2147483648
    %v1663 = vxor.u32 %v1589, 2147483648
    %v1664 = vxor.u32 %v1638, 2147483648
    %v1665 = vxor.u32 %v1485, 2147483648
    %v1666 = vxor.u32 %v1487, 2147483648
    %v1667 = vxor.u32 %v1538, 2147483648
    %v1668 = vxor.u32 %v1540, 2147483648
    %v1669 = vxor.u32 %v1591, 2147483648
    %v1670 = vxor.u32 %v1593, 2147483648
    %v1671 = vxor.u32 %v1641, 2147483648
    %v1672 = vmul.f32 %v1644, 1.442695
    %v1673 = vpow.pop %v1672
    %v1674 = vmul.f32 %v1645, 1.442695
    %v1675 = vpow.pop %v1674
    %v1676 = vmul.f32 %v1646, 1.442695
    %v1677 = vpow.pop %v1676
    %v1678 = vmul.f32 %v1647, 1.442695
    %v1679 = vpow.pop %v1678
    %v1680 = vmul.f32 %v1648, 1.442695
    %v1681 = vpow.pop %v1680
    %v1682 = vmul.f32 %v1649, 1.442695
    %v1683 = vpow.pop %v1682
    %v1684 = vmul.f32 %v1650, 1.442695
    %v1685 = vpow.pop %v1684
    %v1686 = vmul.f32 %v1651, 1.442695
    %v1687 = vpow.pop %v1686
    %v1688 = vmul.f32 %v1652, 1.442695
    %v1689 = vpow.pop %v1688
    %v1690 = vmul.f32 %v1653, 1.442695
    %v1691 = vpow.pop %v1690
    %v1692 = vmul.f32 %v1654, 1.442695
    %v1693 = vpow.pop %v1692
    %v1694 = vmul.f32 %v1655, 1.442695
    %v1695 = vpow.pop %v1694
    %v1696 = vmul.f32 %v1656, 1.442695
    %v1697 = vpow.pop %v1696
    %v1698 = vmul.f32 %v1657, 1.442695
    %v1699 = vpow.pop %v1698
    %v1700 = vmul.f32 %v1658, 1.442695
    %v1701 = vpow.pop %v1700
    %v1702 = vmul.f32 %v1659, 1.442695
    %v1703 = vpow.pop %v1702
    %v1704 = vmul.f32 %v1660, 1.442695
    %v1705 = vpow.pop %v1704
    %v1706 = vmul.f32 %v1661, 1.442695
    %v1707 = vpow.pop %v1706
    %v1708 = vmul.f32 %v1662, 1.442695
    %v1709 = vpow.pop %v1708
    %v1710 = vmul.f32 %v1663, 1.442695
    %v1711 = vpow.pop %v1710
    %v1712 = vmul.f32 %v1664, 1.442695
    %v1713 = vpow.pop %v1712
    %v1714 = vmul.f32 %v1665, 1.442695
    %v1715 = vpow.pop %v1714
    %v1716 = vmul.f32 %v1666, 1.442695
    %v1717 = vpow.pop %v1716
    %v1718 = vmul.f32 %v1667, 1.442695
    %v1719 = vpow.pop %v1718
    %v1720 = vmul.f32 %v1668, 1.442695
    %v1721 = vpow.pop %v1720
    %v1722 = vmul.f32 %v1669, 1.442695
    %v1723 = vpow.pop %v1722
    %v1724 = vmul.f32 %v1670, 1.442695
    %v1725 = vpow.pop %v1724
    %v1726 = vmul.f32 %v1671, 1.442695
    %v1727 = vpow.pop %v1726
    %v1728 = vadd.f32 %v1673, 1.0
    %v1729 = vadd.f32 %v1675, 1.0
    %v1730 = vadd.f32 %v1677, 1.0
    %v1731 = vadd.f32 %v1679, 1.0
    %v1732 = vadd.f32 %v1681, 1.0
    %v1733 = vadd.f32 %v1683, 1.0
    %v1734 = vadd.f32 %v1685, 1.0
    %v1735 = vadd.f32 %v1687, 1.0
    %v1736 = vadd.f32 %v1689, 1.0
    %v1737 = vadd.f32 %v1691, 1.0
    %v1738 = vadd.f32 %v1693, 1.0
    %v1739 = vadd.f32 %v1695, 1.0
    %v1740 = vadd.f32 %v1697, 1.0
    %v1741 = vadd.f32 %v1699, 1.0
    %v1742 = vadd.f32 %v1701, 1.0
    %v1743 = vadd.f32 %v1703, 1.0
    %v1744 = vadd.f32 %v1705, 1.0
    %v1745 = vadd.f32 %v1707, 1.0
    %v1746 = vadd.f32 %v1709, 1.0
    %v1747 = vadd.f32 %v1711, 1.0
    %v1748 = vadd.f32 %v1713, 1.0
    %v1749 = vadd.f32 %v1715, 1.0
    %v1750 = vadd.f32 %v1717, 1.0
    %v1751 = vadd.f32 %v1719, 1.0
    %v1752 = vadd.f32 %v1721, 1.0
    %v1753 = vadd.f32 %v1723, 1.0
    %v1754 = vadd.f32 %v1725, 1.0
    %v1755 = vadd.f32 %v1727, 1.0
    %v1756 = vrcp.pop %v1728
    %v1757 = vmul.f32 1.0, %v1756
    %v1758 = vrcp.pop %v1729
    %v1759 = vmul.f32 1.0, %v1758
    %v1760 = vrcp.pop %v1730
    %v1761 = vmul.f32 1.0, %v1760
    %v1762 = vrcp.pop %v1731
    %v1763 = vmul.f32 1.0, %v1762
    %v1764 = vrcp.pop %v1732
    %v1765 = vmul.f32 1.0, %v1764
    %v1766 = vrcp.pop %v1733
    %v1767 = vmul.f32 1.0, %v1766
    %v1768 = vrcp.pop %v1734
    %v1769 = vmul.f32 1.0, %v1768
    %v1770 = vrcp.pop %v1735
    %v1771 = vmul.f32 1.0, %v1770
    %v1772 = vrcp.pop %v1736
    %v1773 = vmul.f32 1.0, %v1772
    %v1774 = vrcp.pop %v1737
    %v1775 = vmul.f32 1.0, %v1774
    %v1776 = vrcp.pop %v1738
    %v1777 = vmul.f32 1.0, %v1776
    %v1778 = vrcp.pop %v1739
    %v1779 = vmul.f32 1.0, %v1778
    %v1780 = vrcp.pop %v1740
    %v1781 = vmul.f32 1.0, %v1780
    %v1782 = vrcp.pop %v1741
    %v1783 = vmul.f32 1.0, %v1782
    %v1784 = vrcp.pop %v1742
    %v1785 = vmul.f32 1.0, %v1784
    %v1786 = vrcp.pop %v1743
    %v1787 = vmul.f32 1.0, %v1786
    %v1788 = vrcp.pop %v1744
    %v1789 = vmul.f32 1.0, %v1788
    %v1790 = vrcp.pop %v1745
    %v1791 = vmul.f32 1.0, %v1790
    %v1792 = vrcp.pop %v1746
    %v1793 = vmul.f32 1.0, %v1792
    %v1794 = vrcp.pop %v1747
    %v1795 = vmul.f32 1.0, %v1794
    %v1796 = vrcp.pop %v1748
    %v1797 = vmul.f32 1.0, %v1796
    %v1798 = vrcp.pop %v1749
    %v1799 = vmul.f32 1.0, %v1798
    %v1800 = vrcp.pop %v1750
    %v1801 = vmul.f32 1.0, %v1800
    %v1802 = vrcp.pop %v1751
    %v1803 = vmul.f32 1.0, %v1802
    %v1804 = vrcp.pop %v1752
    %v1805 = vmul.f32 1.0, %v1804
    %v1806 = vrcp.pop %v1753
    %v1807 = vmul.f32 1.0, %v1806
    %v1808 = vrcp.pop %v1754
    %v1809 = vmul.f32 1.0, %v1808
    %v1810 = vrcp.pop %v1755
    %v1811 = vmul.f32 1.0, %v1810
    %1812 = vst [vmem:[#allocation2] sm:$0xff] %v1757
    %1813 = vst [vmem:[#allocation2 + $0x8] sm:$0xff] %v1759
    %1814 = vst [vmem:[#allocation2 + $0x10] sm:$0xff] %v1761
    %1815 = vst [vmem:[#allocation2 + $0x18] sm:$0xff] %v1763
    %1816 = vst [vmem:[#allocation2 + $0x20] sm:$0xff] %v1765
    %1817 = vst [vmem:[#allocation2 + $0x28] sm:$0xff] %v1767
    %1818 = vst [vmem:[#allocation2 + $0x30] sm:$0xff] %v1769
    %1819 = vst [vmem:[#allocation2 + $0x38] sm:$0xff] %v1771
    %1820 = vst [vmem:[#allocation2 + $0x40] sm:$0xff] %v1773
    %1821 = vst [vmem:[#allocation2 + $0x48] sm:$0xff] %v1775
    %1822 = vst [vmem:[#allocation2 + $0x50] sm:$0xff] %v1777
    %1823 = vst [vmem:[#allocation2 + $0x58] sm:$0xff] %v1779
    %1824 = vst [vmem:[#allocation2 + $0x60] sm:$0xff] %v1781
    %1825 = vst [vmem:[#allocation2 + $0x68] sm:$0xff] %v1783
    %1826 = vst [vmem:[#allocation2 + $0x70] sm:$0xff] %v1785
    %1827 = vst [vmem:[#allocation2 + $0x78] sm:$0xff] %v1787
    %1828 = vst [vmem:[#allocation2 + $0x80] sm:$0xff] %v1789
    %1829 = vst [vmem:[#allocation2 + $0x88] sm:$0xff] %v1791
    %1830 = vst [vmem:[#allocation2 + $0x90] sm:$0xff] %v1793
    %1831 = vst [vmem:[#allocation2 + $0x98] sm:$0xff] %v1795
    %1832 = vst [vmem:[#allocation2 + $0xa0] sm:$0xff] %v1797
    %1833 = vst [vmem:[#allocation2 + $0xa8] sm:$0xff] %v1799
    %1834 = vst [vmem:[#allocation2 + $0xb0] sm:$0xff] %v1801
    %1835 = vst [vmem:[#allocation2 + $0xb8] sm:$0xff] %v1803
    %1836 = vst [vmem:[#allocation2 + $0xc0] sm:$0xff] %v1805
    %1837 = vst [vmem:[#allocation2 + $0xc8] sm:$0xff] %v1807
    %1838 = vst [vmem:[#allocation2 + $0xd0] sm:$0xff] %v1809
    %1839 = vst [vmem:[#allocation2 + $0xd8] sm:$0xff] %v1811
    // Predicated region
    $region38: #{decoder1_forward.1} parent=1 // pred_check
      _
    $region39: #{decoder1_forward.1} parent=1 // pred_check_branch
      %1841 = sbr.rel (0) target = $region41
    $region40: #{decoder1_forward.1} parent=1 // pred_region
      %s1843 = ssub.s32 3584, 3584
      %1844 = vsyncadd [#allocation3], %s1843
      %s1845 = sshll.u32 [#allocation2], 4
      %s1846 = int_to_ptr.vmem [resolvable:$true] %s1845
      %1851 = dma.vmem_to_hbm [thread:$0]  %s1846, 3584, %s9, [#allocation3], 896, 896, 56
    $region41: #{decoder1_forward.1} parent=1 // pred_fallthru
      _
    // Predicated region
    $region42: #{decoder1_forward.1} parent=1 // pred_check
      _
    $region43: #{decoder1_forward.1} parent=1 // pred_check_branch
      %1853 = sbr.rel (0) target = $region45
    $region44: #{decoder1_forward.1} parent=1 // pred_region
      %1854 = dma.done [#allocation3], 3584
    $region45: #{decoder1_forward.1} parent=1 // pred_fallthru
      _
    %1855 = vsyncpa [#allocation3], 1

</llo_original>
